<compile_context>
chip_gen: v7x
topology: tpu7x:2x2x1
jax: 0.10.0
libtpu: 0.0.40
codegen_flags: <defaults>
</compile_context>

<pallas_src>
import functools

import jax
import jax.numpy as jnp
from jax.experimental import pallas as pl
from jax.experimental.pallas import tpu as pltpu

C = 72                                     # real channel count (72 in/out)
CP = 128                                   # lane-padded channel count
K = 3                                      # kernel_size
NUM_LEVELS = 3                             # dilations 1, 2, 4
PMAX = (2 ** (NUM_LEVELS - 1)) * (K - 1)   # = 8, max causal pad (sublane aligned)


def _round_up(n, m):
    return ((n + m - 1) // m) * m


# ------------------------------- fused kernel --------------------------------
def _tcn_kernel(x_ref, w1_ref, b1_ref, w2_ref, b2_ref, out_ref,
                buf, hbuf, cin, ch, *, TT):
    """One (batch, time-tile) step of the fused 3-level TCN.

    x_ref  : (1, TT, CP)                   channel-padded input tile (f32)
    w1_ref : (NUM_LEVELS, K, CP, CP)       conv1 weights (bf16), tap-major
    b1_ref : (NUM_LEVELS, 1, CP)           conv1 biases (f32)
    w2_ref : (NUM_LEVELS, K, CP, CP)       conv2 weights (bf16)
    b2_ref : (NUM_LEVELS, 1, CP)           conv2 biases (f32)
    out_ref: (1, TT, CP)                   output tile (f32)
    buf    : (PMAX+TT, CP) f32 VMEM        current level activation + causal pad
    hbuf   : (PMAX+TT, CP) f32 VMEM        hidden (post conv1) + causal pad
    cin    : (NUM_LEVELS, PMAX, CP) f32    per-level input carry across tiles
    ch     : (NUM_LEVELS, PMAX, CP) f32    per-level hidden carry across tiles
    """
    t = pl.program_id(1)

    # First time-tile of every batch element: causal zero padding (also wipes
    # whatever the previous batch element left behind in the carry scratch).
    @pl.when(t == 0)
    def _():
        cin[...] = jnp.zeros((NUM_LEVELS, PMAX, CP), jnp.float32)
        ch[...] = jnp.zeros((NUM_LEVELS, PMAX, CP), jnp.float32)

    # Load the current input tile at sublane-aligned offset PMAX = 8.
    buf[pl.ds(PMAX, TT), :] = x_ref[0]

    for lvl in range(NUM_LEVELS):          # static unroll over 3 levels
        d = 1 << lvl                       # dilation; causal pad = d*(K-1) <= 8

        # Restore this level's causal carry and save the new carry (last PMAX
        # rows of this level's input) BEFORE the residual store overwrites buf.
        buf[pl.ds(0, PMAX), :] = cin[lvl]
        cin[lvl] = buf[pl.ds(TT, PMAX), :]

        # ---- conv1 (causal, dilated) + bias + ReLU ----
        # K accumulated bf16 MXU dots, f32 accumulation (no lane concat temps).
        acc = jnp.broadcast_to(b1_ref[lvl], (TT, CP))
        for k in range(K):
            off = PMAX - d * (K - 1 - k)
            acc = acc + jnp.dot(
                buf[pl.ds(off, TT), :].astype(jnp.bfloat16),
                w1_ref[lvl, k],
                preferred_element_type=jnp.float32)
        h = jnp.maximum(acc, 0.0)

        hbuf[pl.ds(0, PMAX), :] = ch[lvl]
        hbuf[pl.ds(PMAX, TT), :] = h
        ch[lvl] = hbuf[pl.ds(TT, PMAX), :]

        # ---- conv2 (causal, dilated) + bias + ReLU ----
        acc2 = jnp.broadcast_to(b2_ref[lvl], (TT, CP))
        for k in range(K):
            off = PMAX - d * (K - 1 - k)
            acc2 = acc2 + jnp.dot(
                hbuf[pl.ds(off, TT), :].astype(jnp.bfloat16),
                w2_ref[lvl, k],
                preferred_element_type=jnp.float32)

        # ---- residual (downsample is None: C_in == C_out) + ReLU ----
        res = jnp.maximum(jnp.maximum(acc2, 0.0) + buf[pl.ds(PMAX, TT), :], 0.0)

        if lvl < NUM_LEVELS - 1:
            buf[pl.ds(PMAX, TT), :] = res
        else:
            out_ref[0, :, :] = res         # last level writes the output directly


# --------------------------------- wrapper ------------------------------------
def _pack_conv(w_kio, b_row):
    """(K, C_in, C_out) tap-major weight + (1, C) bias -> lane-padded, bf16 weight."""
    w_pad = jnp.zeros((K, CP, CP), jnp.float32).at[:, :C, :C].set(w_kio)
    b_pad = jnp.zeros((1, CP), jnp.float32).at[:, :C].set(b_row)
    return w_pad.astype(jnp.bfloat16), b_pad


def tcn_encoder_forward(x_bsd, params, *, tile_t=512):
    """TCNEncoder.forward. x_bsd: (batch, seq_len, 72) -> (72, batch, seq_len)."""
    B, T, Cin = x_bsd.shape

    # Time-tile size: sublane aligned, >= PMAX, capped at tile_t.
    TT = min(_round_up(tile_t, 8), _round_up(max(T, PMAX), 8))
    T_pad = _round_up(max(T, TT), TT)
    NT = T_pad // TT

    # Channel-pad to 128 lanes (lane-dense tiles); zero pad lanes so bf16 MXU
    # contractions over the padded rows contribute exactly zero.
    x = jnp.zeros((B, T_pad, CP), jnp.float32).at[:, :T, :Cin].set(
        x_bsd.astype(jnp.float32))

    w1s, b1s, w2s, b2s = [], [], [], []
    for (w1, b1, w2, b2) in params:
        wc1, bc1 = _pack_conv(w1, b1)
        wc2, bc2 = _pack_conv(w2, b2)
        w1s.append(wc1); b1s.append(bc1); w2s.append(wc2); b2s.append(bc2)
    w1 = jnp.stack(w1s)    # (NUM_LEVELS, K, CP, CP) bf16
    b1 = jnp.stack(b1s)    # (NUM_LEVELS, 1, CP)     f32
    w2 = jnp.stack(w2s)
    b2 = jnp.stack(b2s)

    # VMEM budget estimate (scratch + double-buffered I/O tiles + weights) + headroom.
    est = (2 * (PMAX + TT) * CP * 4
           + 2 * NUM_LEVELS * PMAX * CP * 4
           + 2 * 2 * TT * CP * 4
           + 2 * 2 * NUM_LEVELS * K * CP * CP * 2
           + 4 * NUM_LEVELS * CP * 4)
    vmem_limit = int(min(max(4 * est, 16 * 1024 * 1024), 64 * 1024 * 1024))

    kernel = functools.partial(_tcn_kernel, TT=TT)
    out = pl.pallas_call(
        kernel,
        out_shape=jax.ShapeDtypeStruct((B, T_pad, CP), jnp.float32),
        grid_spec=pltpu.PrefetchScalarGridSpec(
            num_scalar_prefetch=0,
            grid=(B, NT),
            in_specs=[
                pl.BlockSpec((1, TT, CP), lambda b, t: (b, t, 0)),
                pl.BlockSpec((NUM_LEVELS, K, CP, CP), lambda b, t: (0, 0, 0, 0)),
                pl.BlockSpec((NUM_LEVELS, 1, CP), lambda b, t: (0, 0, 0)),
                pl.BlockSpec((NUM_LEVELS, K, CP, CP), lambda b, t: (0, 0, 0, 0)),
                pl.BlockSpec((NUM_LEVELS, 1, CP), lambda b, t: (0, 0, 0)),
            ],
            out_specs=pl.BlockSpec((1, TT, CP), lambda b, t: (b, t, 0)),
            scratch_shapes=[
                pltpu.VMEM((PMAX + TT, CP), jnp.float32),          # buf
                pltpu.VMEM((PMAX + TT, CP), jnp.float32),          # hbuf
                pltpu.VMEM((NUM_LEVELS, PMAX, CP), jnp.float32),   # input carry
                pltpu.VMEM((NUM_LEVELS, PMAX, CP), jnp.float32),   # hidden carry
            ],
        ),
        compiler_params=pltpu.CompilerParams(
            dimension_semantics=("parallel", "arbitrary"),
            vmem_limit_bytes=vmem_limit),
    )(x, w1, b1, w2, b2)

    # Drop time/channel padding and produce the PyTorch (C, B, T) layout.
    # TODO(synk): if the downstream consumer accepts (B, T, C) this transpose
    # (one extra HBM pass) can be dropped.
    return jnp.transpose(out[:, :T, :C], (2, 0, 1))


# ------------------------ deterministic parameter init ------------------------
def _make_conv_params(key):
    """Emulate weight_norm(Conv1d(C, C, K)): w = g * v / ||v|| (per out-chan)."""
    kv, kg, kb = jax.random.split(key, 3)
    v = 0.01 * jax.random.normal(kv, (C, C, K), jnp.float32)   # (c_out, c_in, K)
    g = jax.random.uniform(kg, (C, 1, 1), jnp.float32, 0.5, 1.5)
    norm = jnp.sqrt(jnp.sum(v * v, axis=(1, 2), keepdims=True)) + 1e-12
    w_eff = g * v / norm                                        # (c_out, c_in, K)
    w_kio = jnp.transpose(w_eff, (2, 1, 0))                     # (K, c_in, c_out)
    bound = 1.0 / jnp.sqrt(float(C * K))
    b = jax.random.uniform(kb, (1, C), jnp.float32, -bound, bound)
    return w_kio, b


def init_params(key):
    params = []
    for i in range(NUM_LEVELS):
        k1, k2 = jax.random.split(jax.random.fold_in(key, i))
        w1, b1 = _make_conv_params(k1)
        w2, b2 = _make_conv_params(k2)
        params.append((w1, b1, w2, b2))
    return params


# ------------------------------ pure-JAX reference ----------------------------
def _causal_conv_ref(x_btc, w_kio, b, d):
    T = x_btc.shape[1]
    P = d * (K - 1)
    xp = jnp.pad(x_btc, ((0, 0), (P, 0), (0, 0)))
    acc = jnp.zeros(x_btc.shape[:2] + (C,), jnp.float32)
    for k in range(K):
        acc = acc + jnp.einsum('btc,cd->btd', xp[:, k * d:k * d + T, :],
                               w_kio[k])
    return acc + b[None]


def tcn_encoder_ref(x_bsd, params):
    h = x_bsd.astype(jnp.float32)
    for i, (w1, b1, w2, b2) in enumerate(params):
        d = 2 ** i
        a = jnp.maximum(_causal_conv_ref(h, w1, b1, d), 0.0)
        a = jnp.maximum(_causal_conv_ref(a, w2, b2, d), 0.0)
        h = jnp.maximum(a + h, 0.0)
    return jnp.transpose(h, (2, 0, 1))


if __name__ == "__main__":
    key = jax.random.PRNGKey(0)
    kx, kp = jax.random.split(key)

    # Small shapes; tile_t=16 forces multiple time tiles so the cross-tile
    # causal carry (dilations 1, 2, 4) is exercised and validated.
    B, T = 2, 40
    x = jax.random.normal(kx, (B, T, C), jnp.float32)    # (batch, seq_len, 72)
    params = init_params(kp)

    fwd = jax.jit(functools.partial(tcn_encoder_forward, tile_t=16))
    out = jax.block_until_ready(fwd(x, params))
    assert out.shape == (C, B, T), out.shape

    ref = jax.block_until_ready(tcn_encoder_ref(x, params))
    # bf16 MXU operands (f32 accumulation) -> relaxed tolerance vs f32 reference.
    assert jnp.allclose(out, ref, rtol=3e-2, atol=3e-2), \
        float(jnp.max(jnp.abs(out - ref)))

    print("KERNEL_OK")
</pallas_src>

<mosaic_0001>
module attributes {stable_mosaic.version = 11 : i64} {
  func.func @_tcn_kernel(%arg0: i32, %arg1: i32, %arg2: memref<1x16x128xf32, #tpu.memory_space<vmem>>, %arg3: memref<3x3x128x128xbf16, #tpu.memory_space<vmem>>, %arg4: memref<3x1x128xf32, #tpu.memory_space<vmem>>, %arg5: memref<3x3x128x128xbf16, #tpu.memory_space<vmem>>, %arg6: memref<3x1x128xf32, #tpu.memory_space<vmem>>, %arg7: memref<1x16x128xf32, #tpu.memory_space<vmem>>, %arg8: memref<24x128xf32, #tpu.memory_space<vmem>>, %arg9: memref<24x128xf32, #tpu.memory_space<vmem>>, %arg10: memref<3x8x128xf32, #tpu.memory_space<vmem>>, %arg11: memref<3x8x128xf32, #tpu.memory_space<vmem>>) attributes {dimension_semantics = [#tpu.dimension_semantics<parallel>, #tpu.dimension_semantics<arbitrary>], iteration_bounds = array<i64: 2, 3>, scalar_prefetch = 0 : i64, scratch_operands = 4 : i64, tpu.core_type = #tpu.core_type<tc>, window_params = [{transform_indices = @transform_0, window_bounds = array<i64: 1, 16, 128>}, {pipeline_mode = #tpu.pipeline_mode<synchronous>, transform_indices = @transform_1, window_bounds = array<i64: 3, 3, 128, 128>}, {pipeline_mode = #tpu.pipeline_mode<synchronous>, transform_indices = @transform_2, window_bounds = array<i64: 3, 1, 128>}, {pipeline_mode = #tpu.pipeline_mode<synchronous>, transform_indices = @transform_3, window_bounds = array<i64: 3, 3, 128, 128>}, {pipeline_mode = #tpu.pipeline_mode<synchronous>, transform_indices = @transform_4, window_bounds = array<i64: 3, 1, 128>}, {transform_indices = @transform_5, window_bounds = array<i64: 1, 16, 128>}]} {
    %c0_i32 = arith.constant 0 : i32
    %0 = arith.cmpi eq, %arg1, %c0_i32 : i32
    %1 = arith.extui %0 : i1 to i32
    %c0_i32_0 = arith.constant 0 : i32
    %2 = arith.cmpi ne, %1, %c0_i32_0 : i32
    scf.if %2 {
      %cst_229 = arith.constant 0.000000e+00 : f32
      %212 = vector.broadcast %cst_229 : f32 to vector<3x8x128xf32>
      %c0_230 = arith.constant 0 : index
      %c0_231 = arith.constant 0 : index
      %c0_232 = arith.constant 0 : index
      %213 = vector.load %arg10[%c0_230, %c0_231, %c0_232] : memref<3x8x128xf32, #tpu.memory_space<vmem>>, vector<3x8x128xf32>
      tpu.vector_store %arg10[%c0_230, %c0_231, %c0_232], %212 {strides = array<i32>} : memref<3x8x128xf32, #tpu.memory_space<vmem>>, vector<3x8x128xf32>,
      %cst_233 = arith.constant 0.000000e+00 : f32
      %214 = vector.broadcast %cst_233 : f32 to vector<3x8x128xf32>
      %c0_234 = arith.constant 0 : index
      %c0_235 = arith.constant 0 : index
      %c0_236 = arith.constant 0 : index
      %215 = vector.load %arg11[%c0_234, %c0_235, %c0_236] : memref<3x8x128xf32, #tpu.memory_space<vmem>>, vector<3x8x128xf32>
      tpu.vector_store %arg11[%c0_234, %c0_235, %c0_236], %214 {strides = array<i32>} : memref<3x8x128xf32, #tpu.memory_space<vmem>>, vector<3x8x128xf32>,
    } else {
    }
    %c0 = arith.constant 0 : index
    %c0_1 = arith.constant 0 : index
    %c0_2 = arith.constant 0 : index
    %3 = vector.load %arg2[%c0, %c0_1, %c0_2] : memref<1x16x128xf32, #tpu.memory_space<vmem>>, vector<1x16x128xf32>
    %4 = vector.shape_cast %3 : vector<1x16x128xf32> to vector<16x128xf32>
    %c8 = arith.constant 8 : index
    %c0_3 = arith.constant 0 : index
    %5 = vector.load %arg8[%c8, %c0_3] : memref<24x128xf32, #tpu.memory_space<vmem>>, vector<16x128xf32>
    tpu.vector_store %arg8[%c8, %c0_3], %4 {strides = array<i32>} : memref<24x128xf32, #tpu.memory_space<vmem>>, vector<16x128xf32>,
    %c0_4 = arith.constant 0 : index
    %c0_5 = arith.constant 0 : index
    %c0_6 = arith.constant 0 : index
    %6 = vector.load %arg10[%c0_4, %c0_5, %c0_6] : memref<3x8x128xf32, #tpu.memory_space<vmem>>, vector<1x8x128xf32>
    %7 = vector.shape_cast %6 : vector<1x8x128xf32> to vector<8x128xf32>
    %c0_7 = arith.constant 0 : index
    %c0_8 = arith.constant 0 : index
    %8 = vector.load %arg8[%c0_7, %c0_8] : memref<24x128xf32, #tpu.memory_space<vmem>>, vector<8x128xf32>
    tpu.vector_store %arg8[%c0_7, %c0_8], %7 {strides = array<i32>} : memref<24x128xf32, #tpu.memory_space<vmem>>, vector<8x128xf32>,
    %c16 = arith.constant 16 : index
    %c0_9 = arith.constant 0 : index
    %9 = vector.load %arg8[%c16, %c0_9] : memref<24x128xf32, #tpu.memory_space<vmem>>, vector<8x128xf32>
    %c0_10 = arith.constant 0 : index
    %c0_11 = arith.constant 0 : index
    %c0_12 = arith.constant 0 : index
    %10 = vector.load %arg10[%c0_10, %c0_11, %c0_12] : memref<3x8x128xf32, #tpu.memory_space<vmem>>, vector<1x8x128xf32>
    %11 = vector.shape_cast %10 : vector<1x8x128xf32> to vector<8x128xf32>
    %12 = vector.shape_cast %9 : vector<8x128xf32> to vector<1x8x128xf32>
    tpu.vector_store %arg10[%c0_10, %c0_11, %c0_12], %12 {strides = array<i32>} : memref<3x8x128xf32, #tpu.memory_space<vmem>>, vector<1x8x128xf32>,
    %c0_13 = arith.constant 0 : index
    %c0_14 = arith.constant 0 : index
    %c0_15 = arith.constant 0 : index
    %13 = vector.load %arg4[%c0_13, %c0_14, %c0_15] : memref<3x1x128xf32, #tpu.memory_space<vmem>>, vector<1x1x128xf32>
    %14 = vector.shape_cast %13 : vector<1x1x128xf32> to vector<1x128xf32>
    %15 = vector.shape_cast %14 : vector<1x128xf32> to vector<1x128xf32>
    %16 = vector.broadcast %15 : vector<1x128xf32> to vector<16x128xf32>
    %c6 = arith.constant 6 : index
    %c0_16 = arith.constant 0 : index
    %17 = vector.load %arg8[%c6, %c0_16] : memref<24x128xf32, #tpu.memory_space<vmem>>, vector<16x128xf32>
    %18 = arith.truncf %17 : vector<16x128xf32> to vector<16x128xbf16>
    %c0_17 = arith.constant 0 : index
    %c0_18 = arith.constant 0 : index
    %c0_19 = arith.constant 0 : index
    %c0_20 = arith.constant 0 : index
    %19 = vector.load %arg3[%c0_17, %c0_18, %c0_19, %c0_20] : memref<3x3x128x128xbf16, #tpu.memory_space<vmem>>, vector<1x1x128x128xbf16>
    %20 = vector.shape_cast %19 : vector<1x1x128x128xbf16> to vector<128x128xbf16>
    %cst = arith.constant dense<0.000000e+00> : vector<16x128xf32>
    %21 = tpu.matmul %18, %20, %cst {dimension_numbers = #tpu.dot_dimension_numbers<[1], [0], [0], [1], [0, 0, 1, 1], [], []>} : vector<16x128xbf16>, vector<128x128xbf16>, vector<16x128xf32> -> vector<16x128xf32>
    %22 = arith.addf %16, %21 : vector<16x128xf32>
    %c7 = arith.constant 7 : index
    %c0_21 = arith.constant 0 : index
    %23 = vector.load %arg8[%c7, %c0_21] : memref<24x128xf32, #tpu.memory_space<vmem>>, vector<16x128xf32>
    %24 = arith.truncf %23 : vector<16x128xf32> to vector<16x128xbf16>
    %c0_22 = arith.constant 0 : index
    %c1 = arith.constant 1 : index
    %c0_23 = arith.constant 0 : index
    %c0_24 = arith.constant 0 : index
    %25 = vector.load %arg3[%c0_22, %c1, %c0_23, %c0_24] : memref<3x3x128x128xbf16, #tpu.memory_space<vmem>>, vector<1x1x128x128xbf16>
    %26 = vector.shape_cast %25 : vector<1x1x128x128xbf16> to vector<128x128xbf16>
    %cst_25 = arith.constant dense<0.000000e+00> : vector<16x128xf32>
    %27 = tpu.matmul %24, %26, %cst_25 {dimension_numbers = #tpu.dot_dimension_numbers<[1], [0], [0], [1], [0, 0, 1, 1], [], []>} : vector<16x128xbf16>, vector<128x128xbf16>, vector<16x128xf32> -> vector<16x128xf32>
    %28 = arith.addf %22, %27 : vector<16x128xf32>
    %c8_26 = arith.constant 8 : index
    %c0_27 = arith.constant 0 : index
    %29 = vector.load %arg8[%c8_26, %c0_27] : memref<24x128xf32, #tpu.memory_space<vmem>>, vector<16x128xf32>
    %30 = arith.truncf %29 : vector<16x128xf32> to vector<16x128xbf16>
    %c0_28 = arith.constant 0 : index
    %c2 = arith.constant 2 : index
    %c0_29 = arith.constant 0 : index
    %c0_30 = arith.constant 0 : index
    %31 = vector.load %arg3[%c0_28, %c2, %c0_29, %c0_30] : memref<3x3x128x128xbf16, #tpu.memory_space<vmem>>, vector<1x1x128x128xbf16>
    %32 = vector.shape_cast %31 : vector<1x1x128x128xbf16> to vector<128x128xbf16>
    %cst_31 = arith.constant dense<0.000000e+00> : vector<16x128xf32>
    %33 = tpu.matmul %30, %32, %cst_31 {dimension_numbers = #tpu.dot_dimension_numbers<[1], [0], [0], [1], [0, 0, 1, 1], [], []>} : vector<16x128xbf16>, vector<128x128xbf16>, vector<16x128xf32> -> vector<16x128xf32>
    %34 = arith.addf %28, %33 : vector<16x128xf32>
    %cst_32 = arith.constant 0.000000e+00 : f32
    %35 = vector.broadcast %cst_32 : f32 to vector<16x128xf32>
    %36 = arith.maximumf %34, %35 : vector<16x128xf32>
    %c0_33 = arith.constant 0 : index
    %c0_34 = arith.constant 0 : index
    %c0_35 = arith.constant 0 : index
    %37 = vector.load %arg11[%c0_33, %c0_34, %c0_35] : memref<3x8x128xf32, #tpu.memory_space<vmem>>, vector<1x8x128xf32>
    %38 = vector.shape_cast %37 : vector<1x8x128xf32> to vector<8x128xf32>
    %c0_36 = arith.constant 0 : index
    %c0_37 = arith.constant 0 : index
    %39 = vector.load %arg9[%c0_36, %c0_37] : memref<24x128xf32, #tpu.memory_space<vmem>>, vector<8x128xf32>
    tpu.vector_store %arg9[%c0_36, %c0_37], %38 {strides = array<i32>} : memref<24x128xf32, #tpu.memory_space<vmem>>, vector<8x128xf32>,
    %c8_38 = arith.constant 8 : index
    %c0_39 = arith.constant 0 : index
    %40 = vector.load %arg9[%c8_38, %c0_39] : memref<24x128xf32, #tpu.memory_space<vmem>>, vector<16x128xf32>
    tpu.vector_store %arg9[%c8_38, %c0_39], %36 {strides = array<i32>} : memref<24x128xf32, #tpu.memory_space<vmem>>, vector<16x128xf32>,
    %c16_40 = arith.constant 16 : index
    %c0_41 = arith.constant 0 : index
    %41 = vector.load %arg9[%c16_40, %c0_41] : memref<24x128xf32, #tpu.memory_space<vmem>>, vector<8x128xf32>
    %c0_42 = arith.constant 0 : index
    %c0_43 = arith.constant 0 : index
    %c0_44 = arith.constant 0 : index
    %42 = vector.load %arg11[%c0_42, %c0_43, %c0_44] : memref<3x8x128xf32, #tpu.memory_space<vmem>>, vector<1x8x128xf32>
    %43 = vector.shape_cast %42 : vector<1x8x128xf32> to vector<8x128xf32>
    %44 = vector.shape_cast %41 : vector<8x128xf32> to vector<1x8x128xf32>
    tpu.vector_store %arg11[%c0_42, %c0_43, %c0_44], %44 {strides = array<i32>} : memref<3x8x128xf32, #tpu.memory_space<vmem>>, vector<1x8x128xf32>,
    %c0_45 = arith.constant 0 : index
    %c0_46 = arith.constant 0 : index
    %c0_47 = arith.constant 0 : index
    %45 = vector.load %arg6[%c0_45, %c0_46, %c0_47] : memref<3x1x128xf32, #tpu.memory_space<vmem>>, vector<1x1x128xf32>
    %46 = vector.shape_cast %45 : vector<1x1x128xf32> to vector<1x128xf32>
    %47 = vector.shape_cast %46 : vector<1x128xf32> to vector<1x128xf32>
    %48 = vector.broadcast %47 : vector<1x128xf32> to vector<16x128xf32>
    %c6_48 = arith.constant 6 : index
    %c0_49 = arith.constant 0 : index
    %49 = vector.load %arg9[%c6_48, %c0_49] : memref<24x128xf32, #tpu.memory_space<vmem>>, vector<16x128xf32>
    %50 = arith.truncf %49 : vector<16x128xf32> to vector<16x128xbf16>
    %c0_50 = arith.constant 0 : index
    %c0_51 = arith.constant 0 : index
    %c0_52 = arith.constant 0 : index
    %c0_53 = arith.constant 0 : index
    %51 = vector.load %arg5[%c0_50, %c0_51, %c0_52, %c0_53] : memref<3x3x128x128xbf16, #tpu.memory_space<vmem>>, vector<1x1x128x128xbf16>
    %52 = vector.shape_cast %51 : vector<1x1x128x128xbf16> to vector<128x128xbf16>
    %cst_54 = arith.constant dense<0.000000e+00> : vector<16x128xf32>
    %53 = tpu.matmul %50, %52, %cst_54 {dimension_numbers = #tpu.dot_dimension_numbers<[1], [0], [0], [1], [0, 0, 1, 1], [], []>} : vector<16x128xbf16>, vector<128x128xbf16>, vector<16x128xf32> -> vector<16x128xf32>
    %54 = arith.addf %48, %53 : vector<16x128xf32>
    %c7_55 = arith.constant 7 : index
    %c0_56 = arith.constant 0 : index
    %55 = vector.load %arg9[%c7_55, %c0_56] : memref<24x128xf32, #tpu.memory_space<vmem>>, vector<16x128xf32>
    %56 = arith.truncf %55 : vector<16x128xf32> to vector<16x128xbf16>
    %c0_57 = arith.constant 0 : index
    %c1_58 = arith.constant 1 : index
    %c0_59 = arith.constant 0 : index
    %c0_60 = arith.constant 0 : index
    %57 = vector.load %arg5[%c0_57, %c1_58, %c0_59, %c0_60] : memref<3x3x128x128xbf16, #tpu.memory_space<vmem>>, vector<1x1x128x128xbf16>
    %58 = vector.shape_cast %57 : vector<1x1x128x128xbf16> to vector<128x128xbf16>
    %cst_61 = arith.constant dense<0.000000e+00> : vector<16x128xf32>
    %59 = tpu.matmul %56, %58, %cst_61 {dimension_numbers = #tpu.dot_dimension_numbers<[1], [0], [0], [1], [0, 0, 1, 1], [], []>} : vector<16x128xbf16>, vector<128x128xbf16>, vector<16x128xf32> -> vector<16x128xf32>
    %60 = arith.addf %54, %59 : vector<16x128xf32>
    %c8_62 = arith.constant 8 : index
    %c0_63 = arith.constant 0 : index
    %61 = vector.load %arg9[%c8_62, %c0_63] : memref<24x128xf32, #tpu.memory_space<vmem>>, vector<16x128xf32>
    %62 = arith.truncf %61 : vector<16x128xf32> to vector<16x128xbf16>
    %c0_64 = arith.constant 0 : index
    %c2_65 = arith.constant 2 : index
    %c0_66 = arith.constant 0 : index
    %c0_67 = arith.constant 0 : index
    %63 = vector.load %arg5[%c0_64, %c2_65, %c0_66, %c0_67] : memref<3x3x128x128xbf16, #tpu.memory_space<vmem>>, vector<1x1x128x128xbf16>
    %64 = vector.shape_cast %63 : vector<1x1x128x128xbf16> to vector<128x128xbf16>
    %cst_68 = arith.constant dense<0.000000e+00> : vector<16x128xf32>
    %65 = tpu.matmul %62, %64, %cst_68 {dimension_numbers = #tpu.dot_dimension_numbers<[1], [0], [0], [1], [0, 0, 1, 1], [], []>} : vector<16x128xbf16>, vector<128x128xbf16>, vector<16x128xf32> -> vector<16x128xf32>
    %66 = arith.addf %60, %65 : vector<16x128xf32>
    %cst_69 = arith.constant 0.000000e+00 : f32
    %67 = vector.broadcast %cst_69 : f32 to vector<16x128xf32>
    %68 = arith.maximumf %66, %67 : vector<16x128xf32>
    %c8_70 = arith.constant 8 : index
    %c0_71 = arith.constant 0 : index
    %69 = vector.load %arg8[%c8_70, %c0_71] : memref<24x128xf32, #tpu.memory_space<vmem>>, vector<16x128xf32>
    %70 = arith.addf %68, %69 : vector<16x128xf32>
    %cst_72 = arith.constant 0.000000e+00 : f32
    %71 = vector.broadcast %cst_72 : f32 to vector<16x128xf32>
    %72 = arith.maximumf %70, %71 : vector<16x128xf32>
    %c8_73 = arith.constant 8 : index
    %c0_74 = arith.constant 0 : index
    %73 = vector.load %arg8[%c8_73, %c0_74] : memref<24x128xf32, #tpu.memory_space<vmem>>, vector<16x128xf32>
    tpu.vector_store %arg8[%c8_73, %c0_74], %72 {strides = array<i32>} : memref<24x128xf32, #tpu.memory_space<vmem>>, vector<16x128xf32>,
    %c1_75 = arith.constant 1 : index
    %c0_76 = arith.constant 0 : index
    %c0_77 = arith.constant 0 : index
    %74 = vector.load %arg10[%c1_75, %c0_76, %c0_77] : memref<3x8x128xf32, #tpu.memory_space<vmem>>, vector<1x8x128xf32>
    %75 = vector.shape_cast %74 : vector<1x8x128xf32> to vector<8x128xf32>
    %c0_78 = arith.constant 0 : index
    %c0_79 = arith.constant 0 : index
    %76 = vector.load %arg8[%c0_78, %c0_79] : memref<24x128xf32, #tpu.memory_space<vmem>>, vector<8x128xf32>
    tpu.vector_store %arg8[%c0_78, %c0_79], %75 {strides = array<i32>} : memref<24x128xf32, #tpu.memory_space<vmem>>, vector<8x128xf32>,
    %c16_80 = arith.constant 16 : index
    %c0_81 = arith.constant 0 : index
    %77 = vector.load %arg8[%c16_80, %c0_81] : memref<24x128xf32, #tpu.memory_space<vmem>>, vector<8x128xf32>
    %c1_82 = arith.constant 1 : index
    %c0_83 = arith.constant 0 : index
    %c0_84 = arith.constant 0 : index
    %78 = vector.load %arg10[%c1_82, %c0_83, %c0_84] : memref<3x8x128xf32, #tpu.memory_space<vmem>>, vector<1x8x128xf32>
    %79 = vector.shape_cast %78 : vector<1x8x128xf32> to vector<8x128xf32>
    %80 = vector.shape_cast %77 : vector<8x128xf32> to vector<1x8x128xf32>
    tpu.vector_store %arg10[%c1_82, %c0_83, %c0_84], %80 {strides = array<i32>} : memref<3x8x128xf32, #tpu.memory_space<vmem>>, vector<1x8x128xf32>,
    %c1_85 = arith.constant 1 : index
    %c0_86 = arith.constant 0 : index
    %c0_87 = arith.constant 0 : index
    %81 = vector.load %arg4[%c1_85, %c0_86, %c0_87] : memref<3x1x128xf32, #tpu.memory_space<vmem>>, vector<1x1x128xf32>
    %82 = vector.shape_cast %81 : vector<1x1x128xf32> to vector<1x128xf32>
    %83 = vector.shape_cast %82 : vector<1x128xf32> to vector<1x128xf32>
    %84 = vector.broadcast %83 : vector<1x128xf32> to vector<16x128xf32>
    %c4 = arith.constant 4 : index
    %c0_88 = arith.constant 0 : index
    %85 = vector.load %arg8[%c4, %c0_88] : memref<24x128xf32, #tpu.memory_space<vmem>>, vector<16x128xf32>
    %86 = arith.truncf %85 : vector<16x128xf32> to vector<16x128xbf16>
    %c1_89 = arith.constant 1 : index
    %c0_90 = arith.constant 0 : index
    %c0_91 = arith.constant 0 : index
    %c0_92 = arith.constant 0 : index
    %87 = vector.load %arg3[%c1_89, %c0_90, %c0_91, %c0_92] : memref<3x3x128x128xbf16, #tpu.memory_space<vmem>>, vector<1x1x128x128xbf16>
    %88 = vector.shape_cast %87 : vector<1x1x128x128xbf16> to vector<128x128xbf16>
    %cst_93 = arith.constant dense<0.000000e+00> : vector<16x128xf32>
    %89 = tpu.matmul %86, %88, %cst_93 {dimension_numbers = #tpu.dot_dimension_numbers<[1], [0], [0], [1], [0, 0, 1, 1], [], []>} : vector<16x128xbf16>, vector<128x128xbf16>, vector<16x128xf32> -> vector<16x128xf32>
    %90 = arith.addf %84, %89 : vector<16x128xf32>
    %c6_94 = arith.constant 6 : index
    %c0_95 = arith.constant 0 : index
    %91 = vector.load %arg8[%c6_94, %c0_95] : memref<24x128xf32, #tpu.memory_space<vmem>>, vector<16x128xf32>
    %92 = arith.truncf %91 : vector<16x128xf32> to vector<16x128xbf16>
    %c1_96 = arith.constant 1 : index
    %c1_97 = arith.constant 1 : index
    %c0_98 = arith.constant 0 : index
    %c0_99 = arith.constant 0 : index
    %93 = vector.load %arg3[%c1_96, %c1_97, %c0_98, %c0_99] : memref<3x3x128x128xbf16, #tpu.memory_space<vmem>>, vector<1x1x128x128xbf16>
    %94 = vector.shape_cast %93 : vector<1x1x128x128xbf16> to vector<128x128xbf16>
    %cst_100 = arith.constant dense<0.000000e+00> : vector<16x128xf32>
    %95 = tpu.matmul %92, %94, %cst_100 {dimension_numbers = #tpu.dot_dimension_numbers<[1], [0], [0], [1], [0, 0, 1, 1], [], []>} : vector<16x128xbf16>, vector<128x128xbf16>, vector<16x128xf32> -> vector<16x128xf32>
    %96 = arith.addf %90, %95 : vector<16x128xf32>
    %c8_101 = arith.constant 8 : index
    %c0_102 = arith.constant 0 : index
    %97 = vector.load %arg8[%c8_101, %c0_102] : memref<24x128xf32, #tpu.memory_space<vmem>>, vector<16x128xf32>
    %98 = arith.truncf %97 : vector<16x128xf32> to vector<16x128xbf16>
    %c1_103 = arith.constant 1 : index
    %c2_104 = arith.constant 2 : index
    %c0_105 = arith.constant 0 : index
    %c0_106 = arith.constant 0 : index
    %99 = vector.load %arg3[%c1_103, %c2_104, %c0_105, %c0_106] : memref<3x3x128x128xbf16, #tpu.memory_space<vmem>>, vector<1x1x128x128xbf16>
    %100 = vector.shape_cast %99 : vector<1x1x128x128xbf16> to vector<128x128xbf16>
    %cst_107 = arith.constant dense<0.000000e+00> : vector<16x128xf32>
    %101 = tpu.matmul %98, %100, %cst_107 {dimension_numbers = #tpu.dot_dimension_numbers<[1], [0], [0], [1], [0, 0, 1, 1], [], []>} : vector<16x128xbf16>, vector<128x128xbf16>, vector<16x128xf32> -> vector<16x128xf32>
    %102 = arith.addf %96, %101 : vector<16x128xf32>
    %cst_108 = arith.constant 0.000000e+00 : f32
    %103 = vector.broadcast %cst_108 : f32 to vector<16x128xf32>
    %104 = arith.maximumf %102, %103 : vector<16x128xf32>
    %c1_109 = arith.constant 1 : index
    %c0_110 = arith.constant 0 : index
    %c0_111 = arith.constant 0 : index
    %105 = vector.load %arg11[%c1_109, %c0_110, %c0_111] : memref<3x8x128xf32, #tpu.memory_space<vmem>>, vector<1x8x128xf32>
    %106 = vector.shape_cast %105 : vector<1x8x128xf32> to vector<8x128xf32>
    %c0_112 = arith.constant 0 : index
    %c0_113 = arith.constant 0 : index
    %107 = vector.load %arg9[%c0_112, %c0_113] : memref<24x128xf32, #tpu.memory_space<vmem>>, vector<8x128xf32>
    tpu.vector_store %arg9[%c0_112, %c0_113], %106 {strides = array<i32>} : memref<24x128xf32, #tpu.memory_space<vmem>>, vector<8x128xf32>,
    %c8_114 = arith.constant 8 : index
    %c0_115 = arith.constant 0 : index
    %108 = vector.load %arg9[%c8_114, %c0_115] : memref<24x128xf32, #tpu.memory_space<vmem>>, vector<16x128xf32>
    tpu.vector_store %arg9[%c8_114, %c0_115], %104 {strides = array<i32>} : memref<24x128xf32, #tpu.memory_space<vmem>>, vector<16x128xf32>,
    %c16_116 = arith.constant 16 : index
    %c0_117 = arith.constant 0 : index
    %109 = vector.load %arg9[%c16_116, %c0_117] : memref<24x128xf32, #tpu.memory_space<vmem>>, vector<8x128xf32>
    %c1_118 = arith.constant 1 : index
    %c0_119 = arith.constant 0 : index
    %c0_120 = arith.constant 0 : index
    %110 = vector.load %arg11[%c1_118, %c0_119, %c0_120] : memref<3x8x128xf32, #tpu.memory_space<vmem>>, vector<1x8x128xf32>
    %111 = vector.shape_cast %110 : vector<1x8x128xf32> to vector<8x128xf32>
    %112 = vector.shape_cast %109 : vector<8x128xf32> to vector<1x8x128xf32>
    tpu.vector_store %arg11[%c1_118, %c0_119, %c0_120], %112 {strides = array<i32>} : memref<3x8x128xf32, #tpu.memory_space<vmem>>, vector<1x8x128xf32>,
    %c1_121 = arith.constant 1 : index
    %c0_122 = arith.constant 0 : index
    %c0_123 = arith.constant 0 : index
    %113 = vector.load %arg6[%c1_121, %c0_122, %c0_123] : memref<3x1x128xf32, #tpu.memory_space<vmem>>, vector<1x1x128xf32>
    %114 = vector.shape_cast %113 : vector<1x1x128xf32> to vector<1x128xf32>
    %115 = vector.shape_cast %114 : vector<1x128xf32> to vector<1x128xf32>
    %116 = vector.broadcast %115 : vector<1x128xf32> to vector<16x128xf32>
    %c4_124 = arith.constant 4 : index
    %c0_125 = arith.constant 0 : index
    %117 = vector.load %arg9[%c4_124, %c0_125] : memref<24x128xf32, #tpu.memory_space<vmem>>, vector<16x128xf32>
    %118 = arith.truncf %117 : vector<16x128xf32> to vector<16x128xbf16>
    %c1_126 = arith.constant 1 : index
    %c0_127 = arith.constant 0 : index
    %c0_128 = arith.constant 0 : index
    %c0_129 = arith.constant 0 : index
    %119 = vector.load %arg5[%c1_126, %c0_127, %c0_128, %c0_129] : memref<3x3x128x128xbf16, #tpu.memory_space<vmem>>, vector<1x1x128x128xbf16>
    %120 = vector.shape_cast %119 : vector<1x1x128x128xbf16> to vector<128x128xbf16>
    %cst_130 = arith.constant dense<0.000000e+00> : vector<16x128xf32>
    %121 = tpu.matmul %118, %120, %cst_130 {dimension_numbers = #tpu.dot_dimension_numbers<[1], [0], [0], [1], [0, 0, 1, 1], [], []>} : vector<16x128xbf16>, vector<128x128xbf16>, vector<16x128xf32> -> vector<16x128xf32>
    %122 = arith.addf %116, %121 : vector<16x128xf32>
    %c6_131 = arith.constant 6 : index
    %c0_132 = arith.constant 0 : index
    %123 = vector.load %arg9[%c6_131, %c0_132] : memref<24x128xf32, #tpu.memory_space<vmem>>, vector<16x128xf32>
    %124 = arith.truncf %123 : vector<16x128xf32> to vector<16x128xbf16>
    %c1_133 = arith.constant 1 : index
    %c1_134 = arith.constant 1 : index
    %c0_135 = arith.constant 0 : index
    %c0_136 = arith.constant 0 : index
    %125 = vector.load %arg5[%c1_133, %c1_134, %c0_135, %c0_136] : memref<3x3x128x128xbf16, #tpu.memory_space<vmem>>, vector<1x1x128x128xbf16>
    %126 = vector.shape_cast %125 : vector<1x1x128x128xbf16> to vector<128x128xbf16>
    %cst_137 = arith.constant dense<0.000000e+00> : vector<16x128xf32>
    %127 = tpu.matmul %124, %126, %cst_137 {dimension_numbers = #tpu.dot_dimension_numbers<[1], [0], [0], [1], [0, 0, 1, 1], [], []>} : vector<16x128xbf16>, vector<128x128xbf16>, vector<16x128xf32> -> vector<16x128xf32>
    %128 = arith.addf %122, %127 : vector<16x128xf32>
    %c8_138 = arith.constant 8 : index
    %c0_139 = arith.constant 0 : index
    %129 = vector.load %arg9[%c8_138, %c0_139] : memref<24x128xf32, #tpu.memory_space<vmem>>, vector<16x128xf32>
    %130 = arith.truncf %129 : vector<16x128xf32> to vector<16x128xbf16>
    %c1_140 = arith.constant 1 : index
    %c2_141 = arith.constant 2 : index
    %c0_142 = arith.constant 0 : index
    %c0_143 = arith.constant 0 : index
    %131 = vector.load %arg5[%c1_140, %c2_141, %c0_142, %c0_143] : memref<3x3x128x128xbf16, #tpu.memory_space<vmem>>, vector<1x1x128x128xbf16>
    %132 = vector.shape_cast %131 : vector<1x1x128x128xbf16> to vector<128x128xbf16>
    %cst_144 = arith.constant dense<0.000000e+00> : vector<16x128xf32>
    %133 = tpu.matmul %130, %132, %cst_144 {dimension_numbers = #tpu.dot_dimension_numbers<[1], [0], [0], [1], [0, 0, 1, 1], [], []>} : vector<16x128xbf16>, vector<128x128xbf16>, vector<16x128xf32> -> vector<16x128xf32>
    %134 = arith.addf %128, %133 : vector<16x128xf32>
    %cst_145 = arith.constant 0.000000e+00 : f32
    %135 = vector.broadcast %cst_145 : f32 to vector<16x128xf32>
    %136 = arith.maximumf %134, %135 : vector<16x128xf32>
    %c8_146 = arith.constant 8 : index
    %c0_147 = arith.constant 0 : index
    %137 = vector.load %arg8[%c8_146, %c0_147] : memref<24x128xf32, #tpu.memory_space<vmem>>, vector<16x128xf32>
    %138 = arith.addf %136, %137 : vector<16x128xf32>
    %cst_148 = arith.constant 0.000000e+00 : f32
    %139 = vector.broadcast %cst_148 : f32 to vector<16x128xf32>
    %140 = arith.maximumf %138, %139 : vector<16x128xf32>
    %c8_149 = arith.constant 8 : index
    %c0_150 = arith.constant 0 : index
    %141 = vector.load %arg8[%c8_149, %c0_150] : memref<24x128xf32, #tpu.memory_space<vmem>>, vector<16x128xf32>
    tpu.vector_store %arg8[%c8_149, %c0_150], %140 {strides = array<i32>} : memref<24x128xf32, #tpu.memory_space<vmem>>, vector<16x128xf32>,
    %c2_151 = arith.constant 2 : index
    %c0_152 = arith.constant 0 : index
    %c0_153 = arith.constant 0 : index
    %142 = vector.load %arg10[%c2_151, %c0_152, %c0_153] : memref<3x8x128xf32, #tpu.memory_space<vmem>>, vector<1x8x128xf32>
    %143 = vector.shape_cast %142 : vector<1x8x128xf32> to vector<8x128xf32>
    %c0_154 = arith.constant 0 : index
    %c0_155 = arith.constant 0 : index
    %144 = vector.load %arg8[%c0_154, %c0_155] : memref<24x128xf32, #tpu.memory_space<vmem>>, vector<8x128xf32>
    tpu.vector_store %arg8[%c0_154, %c0_155], %143 {strides = array<i32>} : memref<24x128xf32, #tpu.memory_space<vmem>>, vector<8x128xf32>,
    %c16_156 = arith.constant 16 : index
    %c0_157 = arith.constant 0 : index
    %145 = vector.load %arg8[%c16_156, %c0_157] : memref<24x128xf32, #tpu.memory_space<vmem>>, vector<8x128xf32>
    %c2_158 = arith.constant 2 : index
    %c0_159 = arith.constant 0 : index
    %c0_160 = arith.constant 0 : index
    %146 = vector.load %arg10[%c2_158, %c0_159, %c0_160] : memref<3x8x128xf32, #tpu.memory_space<vmem>>, vector<1x8x128xf32>
    %147 = vector.shape_cast %146 : vector<1x8x128xf32> to vector<8x128xf32>
    %148 = vector.shape_cast %145 : vector<8x128xf32> to vector<1x8x128xf32>
    tpu.vector_store %arg10[%c2_158, %c0_159, %c0_160], %148 {strides = array<i32>} : memref<3x8x128xf32, #tpu.memory_space<vmem>>, vector<1x8x128xf32>,
    %c2_161 = arith.constant 2 : index
    %c0_162 = arith.constant 0 : index
    %c0_163 = arith.constant 0 : index
    %149 = vector.load %arg4[%c2_161, %c0_162, %c0_163] : memref<3x1x128xf32, #tpu.memory_space<vmem>>, vector<1x1x128xf32>
    %150 = vector.shape_cast %149 : vector<1x1x128xf32> to vector<1x128xf32>
    %151 = vector.shape_cast %150 : vector<1x128xf32> to vector<1x128xf32>
    %152 = vector.broadcast %151 : vector<1x128xf32> to vector<16x128xf32>
    %c0_164 = arith.constant 0 : index
    %c0_165 = arith.constant 0 : index
    %153 = vector.load %arg8[%c0_164, %c0_165] : memref<24x128xf32, #tpu.memory_space<vmem>>, vector<16x128xf32>
    %154 = arith.truncf %153 : vector<16x128xf32> to vector<16x128xbf16>
    %c2_166 = arith.constant 2 : index
    %c0_167 = arith.constant 0 : index
    %c0_168 = arith.constant 0 : index
    %c0_169 = arith.constant 0 : index
    %155 = vector.load %arg3[%c2_166, %c0_167, %c0_168, %c0_169] : memref<3x3x128x128xbf16, #tpu.memory_space<vmem>>, vector<1x1x128x128xbf16>
    %156 = vector.shape_cast %155 : vector<1x1x128x128xbf16> to vector<128x128xbf16>
    %cst_170 = arith.constant dense<0.000000e+00> : vector<16x128xf32>
    %157 = tpu.matmul %154, %156, %cst_170 {dimension_numbers = #tpu.dot_dimension_numbers<[1], [0], [0], [1], [0, 0, 1, 1], [], []>} : vector<16x128xbf16>, vector<128x128xbf16>, vector<16x128xf32> -> vector<16x128xf32>
    %158 = arith.addf %152, %157 : vector<16x128xf32>
    %c4_171 = arith.constant 4 : index
    %c0_172 = arith.constant 0 : index
    %159 = vector.load %arg8[%c4_171, %c0_172] : memref<24x128xf32, #tpu.memory_space<vmem>>, vector<16x128xf32>
    %160 = arith.truncf %159 : vector<16x128xf32> to vector<16x128xbf16>
    %c2_173 = arith.constant 2 : index
    %c1_174 = arith.constant 1 : index
    %c0_175 = arith.constant 0 : index
    %c0_176 = arith.constant 0 : index
    %161 = vector.load %arg3[%c2_173, %c1_174, %c0_175, %c0_176] : memref<3x3x128x128xbf16, #tpu.memory_space<vmem>>, vector<1x1x128x128xbf16>
    %162 = vector.shape_cast %161 : vector<1x1x128x128xbf16> to vector<128x128xbf16>
    %cst_177 = arith.constant dense<0.000000e+00> : vector<16x128xf32>
    %163 = tpu.matmul %160, %162, %cst_177 {dimension_numbers = #tpu.dot_dimension_numbers<[1], [0], [0], [1], [0, 0, 1, 1], [], []>} : vector<16x128xbf16>, vector<128x128xbf16>, vector<16x128xf32> -> vector<16x128xf32>
    %164 = arith.addf %158, %163 : vector<16x128xf32>
    %c8_178 = arith.constant 8 : index
    %c0_179 = arith.constant 0 : index
    %165 = vector.load %arg8[%c8_178, %c0_179] : memref<24x128xf32, #tpu.memory_space<vmem>>, vector<16x128xf32>
    %166 = arith.truncf %165 : vector<16x128xf32> to vector<16x128xbf16>
    %c2_180 = arith.constant 2 : index
    %c2_181 = arith.constant 2 : index
    %c0_182 = arith.constant 0 : index
    %c0_183 = arith.constant 0 : index
    %167 = vector.load %arg3[%c2_180, %c2_181, %c0_182, %c0_183] : memref<3x3x128x128xbf16, #tpu.memory_space<vmem>>, vector<1x1x128x128xbf16>
    %168 = vector.shape_cast %167 : vector<1x1x128x128xbf16> to vector<128x128xbf16>
    %cst_184 = arith.constant dense<0.000000e+00> : vector<16x128xf32>
    %169 = tpu.matmul %166, %168, %cst_184 {dimension_numbers = #tpu.dot_dimension_numbers<[1], [0], [0], [1], [0, 0, 1, 1], [], []>} : vector<16x128xbf16>, vector<128x128xbf16>, vector<16x128xf32> -> vector<16x128xf32>
    %170 = arith.addf %164, %169 : vector<16x128xf32>
    %cst_185 = arith.constant 0.000000e+00 : f32
    %171 = vector.broadcast %cst_185 : f32 to vector<16x128xf32>
    %172 = arith.maximumf %170, %171 : vector<16x128xf32>
    %c2_186 = arith.constant 2 : index
    %c0_187 = arith.constant 0 : index
    %c0_188 = arith.constant 0 : index
    %173 = vector.load %arg11[%c2_186, %c0_187, %c0_188] : memref<3x8x128xf32, #tpu.memory_space<vmem>>, vector<1x8x128xf32>
    %174 = vector.shape_cast %173 : vector<1x8x128xf32> to vector<8x128xf32>
    %c0_189 = arith.constant 0 : index
    %c0_190 = arith.constant 0 : index
    %175 = vector.load %arg9[%c0_189, %c0_190] : memref<24x128xf32, #tpu.memory_space<vmem>>, vector<8x128xf32>
    tpu.vector_store %arg9[%c0_189, %c0_190], %174 {strides = array<i32>} : memref<24x128xf32, #tpu.memory_space<vmem>>, vector<8x128xf32>,
    %c8_191 = arith.constant 8 : index
    %c0_192 = arith.constant 0 : index
    %176 = vector.load %arg9[%c8_191, %c0_192] : memref<24x128xf32, #tpu.memory_space<vmem>>, vector<16x128xf32>
    tpu.vector_store %arg9[%c8_191, %c0_192], %172 {strides = array<i32>} : memref<24x128xf32, #tpu.memory_space<vmem>>, vector<16x128xf32>,
    %c16_193 = arith.constant 16 : index
    %c0_194 = arith.constant 0 : index
    %177 = vector.load %arg9[%c16_193, %c0_194] : memref<24x128xf32, #tpu.memory_space<vmem>>, vector<8x128xf32>
    %c2_195 = arith.constant 2 : index
    %c0_196 = arith.constant 0 : index
    %c0_197 = arith.constant 0 : index
    %178 = vector.load %arg11[%c2_195, %c0_196, %c0_197] : memref<3x8x128xf32, #tpu.memory_space<vmem>>, vector<1x8x128xf32>
    %179 = vector.shape_cast %178 : vector<1x8x128xf32> to vector<8x128xf32>
    %180 = vector.shape_cast %177 : vector<8x128xf32> to vector<1x8x128xf32>
    tpu.vector_store %arg11[%c2_195, %c0_196, %c0_197], %180 {strides = array<i32>} : memref<3x8x128xf32, #tpu.memory_space<vmem>>, vector<1x8x128xf32>,
    %c2_198 = arith.constant 2 : index
    %c0_199 = arith.constant 0 : index
    %c0_200 = arith.constant 0 : index
    %181 = vector.load %arg6[%c2_198, %c0_199, %c0_200] : memref<3x1x128xf32, #tpu.memory_space<vmem>>, vector<1x1x128xf32>
    %182 = vector.shape_cast %181 : vector<1x1x128xf32> to vector<1x128xf32>
    %183 = vector.shape_cast %182 : vector<1x128xf32> to vector<1x128xf32>
    %184 = vector.broadcast %183 : vector<1x128xf32> to vector<16x128xf32>
    %c0_201 = arith.constant 0 : index
    %c0_202 = arith.constant 0 : index
    %185 = vector.load %arg9[%c0_201, %c0_202] : memref<24x128xf32, #tpu.memory_space<vmem>>, vector<16x128xf32>
    %186 = arith.truncf %185 : vector<16x128xf32> to vector<16x128xbf16>
    %c2_203 = arith.constant 2 : index
    %c0_204 = arith.constant 0 : index
    %c0_205 = arith.constant 0 : index
    %c0_206 = arith.constant 0 : index
    %187 = vector.load %arg5[%c2_203, %c0_204, %c0_205, %c0_206] : memref<3x3x128x128xbf16, #tpu.memory_space<vmem>>, vector<1x1x128x128xbf16>
    %188 = vector.shape_cast %187 : vector<1x1x128x128xbf16> to vector<128x128xbf16>
    %cst_207 = arith.constant dense<0.000000e+00> : vector<16x128xf32>
    %189 = tpu.matmul %186, %188, %cst_207 {dimension_numbers = #tpu.dot_dimension_numbers<[1], [0], [0], [1], [0, 0, 1, 1], [], []>} : vector<16x128xbf16>, vector<128x128xbf16>, vector<16x128xf32> -> vector<16x128xf32>
    %190 = arith.addf %184, %189 : vector<16x128xf32>
    %c4_208 = arith.constant 4 : index
    %c0_209 = arith.constant 0 : index
    %191 = vector.load %arg9[%c4_208, %c0_209] : memref<24x128xf32, #tpu.memory_space<vmem>>, vector<16x128xf32>
    %192 = arith.truncf %191 : vector<16x128xf32> to vector<16x128xbf16>
    %c2_210 = arith.constant 2 : index
    %c1_211 = arith.constant 1 : index
    %c0_212 = arith.constant 0 : index
    %c0_213 = arith.constant 0 : index
    %193 = vector.load %arg5[%c2_210, %c1_211, %c0_212, %c0_213] : memref<3x3x128x128xbf16, #tpu.memory_space<vmem>>, vector<1x1x128x128xbf16>
    %194 = vector.shape_cast %193 : vector<1x1x128x128xbf16> to vector<128x128xbf16>
    %cst_214 = arith.constant dense<0.000000e+00> : vector<16x128xf32>
    %195 = tpu.matmul %192, %194, %cst_214 {dimension_numbers = #tpu.dot_dimension_numbers<[1], [0], [0], [1], [0, 0, 1, 1], [], []>} : vector<16x128xbf16>, vector<128x128xbf16>, vector<16x128xf32> -> vector<16x128xf32>
    %196 = arith.addf %190, %195 : vector<16x128xf32>
    %c8_215 = arith.constant 8 : index
    %c0_216 = arith.constant 0 : index
    %197 = vector.load %arg9[%c8_215, %c0_216] : memref<24x128xf32, #tpu.memory_space<vmem>>, vector<16x128xf32>
    %198 = arith.truncf %197 : vector<16x128xf32> to vector<16x128xbf16>
    %c2_217 = arith.constant 2 : index
    %c2_218 = arith.constant 2 : index
    %c0_219 = arith.constant 0 : index
    %c0_220 = arith.constant 0 : index
    %199 = vector.load %arg5[%c2_217, %c2_218, %c0_219, %c0_220] : memref<3x3x128x128xbf16, #tpu.memory_space<vmem>>, vector<1x1x128x128xbf16>
    %200 = vector.shape_cast %199 : vector<1x1x128x128xbf16> to vector<128x128xbf16>
    %cst_221 = arith.constant dense<0.000000e+00> : vector<16x128xf32>
    %201 = tpu.matmul %198, %200, %cst_221 {dimension_numbers = #tpu.dot_dimension_numbers<[1], [0], [0], [1], [0, 0, 1, 1], [], []>} : vector<16x128xbf16>, vector<128x128xbf16>, vector<16x128xf32> -> vector<16x128xf32>
    %202 = arith.addf %196, %201 : vector<16x128xf32>
    %cst_222 = arith.constant 0.000000e+00 : f32
    %203 = vector.broadcast %cst_222 : f32 to vector<16x128xf32>
    %204 = arith.maximumf %202, %203 : vector<16x128xf32>
    %c8_223 = arith.constant 8 : index
    %c0_224 = arith.constant 0 : index
    %205 = vector.load %arg8[%c8_223, %c0_224] : memref<24x128xf32, #tpu.memory_space<vmem>>, vector<16x128xf32>
    %206 = arith.addf %204, %205 : vector<16x128xf32>
    %cst_225 = arith.constant 0.000000e+00 : f32
    %207 = vector.broadcast %cst_225 : f32 to vector<16x128xf32>
    %208 = arith.maximumf %206, %207 : vector<16x128xf32>
    %c0_226 = arith.constant 0 : index
    %c0_227 = arith.constant 0 : index
    %c0_228 = arith.constant 0 : index
    %209 = vector.load %arg7[%c0_226, %c0_227, %c0_228] : memref<1x16x128xf32, #tpu.memory_space<vmem>>, vector<1x16x128xf32>
    %210 = vector.shape_cast %209 : vector<1x16x128xf32> to vector<16x128xf32>
    %211 = vector.shape_cast %208 : vector<16x128xf32> to vector<1x16x128xf32>
    tpu.vector_store %arg7[%c0_226, %c0_227, %c0_228], %211 {strides = array<i32>} : memref<1x16x128xf32, #tpu.memory_space<vmem>>, vector<1x16x128xf32>,
    return
  }
  func.func @transform_0(%arg0: i32, %arg1: i32) -> (i32, i32, i32) {
    %c0_i32 = arith.constant 0 : i32
    %c0_i32_0 = arith.constant 0 : i32
    return %arg0, %arg1, %c0_i32 : i32, i32, i32
  }
  func.func @transform_1(%arg0: i32, %arg1: i32) -> (i32, i32, i32, i32) {
    %c0_i32 = arith.constant 0 : i32
    %c0_i32_0 = arith.constant 0 : i32
    %c0_i32_1 = arith.constant 0 : i32
    %c0_i32_2 = arith.constant 0 : i32
    %c0_i32_3 = arith.constant 0 : i32
    return %c0_i32, %c0_i32_0, %c0_i32_1, %c0_i32_2 : i32, i32, i32, i32
  }
  func.func @transform_2(%arg0: i32, %arg1: i32) -> (i32, i32, i32) {
    %c0_i32 = arith.constant 0 : i32
    %c0_i32_0 = arith.constant 0 : i32
    %c0_i32_1 = arith.constant 0 : i32
    %c0_i32_2 = arith.constant 0 : i32
    return %c0_i32, %c0_i32_0, %c0_i32_1 : i32, i32, i32
  }
  func.func @transform_3(%arg0: i32, %arg1: i32) -> (i32, i32, i32, i32) {
    %c0_i32 = arith.constant 0 : i32
    %c0_i32_0 = arith.constant 0 : i32
    %c0_i32_1 = arith.constant 0 : i32
    %c0_i32_2 = arith.constant 0 : i32
    %c0_i32_3 = arith.constant 0 : i32
    return %c0_i32, %c0_i32_0, %c0_i32_1, %c0_i32_2 : i32, i32, i32, i32
  }
  func.func @transform_4(%arg0: i32, %arg1: i32) -> (i32, i32, i32) {
    %c0_i32 = arith.constant 0 : i32
    %c0_i32_0 = arith.constant 0 : i32
    %c0_i32_1 = arith.constant 0 : i32
    %c0_i32_2 = arith.constant 0 : i32
    return %c0_i32, %c0_i32_0, %c0_i32_1 : i32, i32, i32
  }
  func.func @transform_5(%arg0: i32, %arg1: i32) -> (i32, i32, i32) {
    %c0_i32 = arith.constant 0 : i32
    %c0_i32_0 = arith.constant 0 : i32
    return %arg0, %arg1, %c0_i32 : i32, i32, i32
  }
}

</mosaic_0001>

<llo_original>
// kernel: tcn_encoder_forward.1
$region0: #{tcn_encoder_forward.1}
  #allocation0 [shape = 'u32[]', space=smem, size = 0x4, offset = 0x4, fixed_abs, tag = 'smem constant byte address 0x4 - core index']
  #allocation1 [shape = 'u32[144,128]{1,0:T(1,128)}', space=vmem, size = 0x12000, scoped, tag = 'internal scratch']
  #allocation2 [shape = 'f32[24,128]{1,0:T(8,128)}', space=vmem, size = 0x3000, scoped, tag = 'scratch operand']
  #allocation3 [shape = 'f32[24,128]{1,0:T(8,128)}', space=vmem, size = 0x3000, scoped, tag = 'scratch operand']
  #allocation4 [shape = 'f32[3,8,128]{2,1,0:T(8,128)}', space=vmem, size = 0x3000, scoped, tag = 'scratch operand']
  #allocation5 [shape = 'f32[3,8,128]{2,1,0:T(8,128)}', space=vmem, size = 0x3000, scoped, tag = 'scratch operand']
  %s0 = inlined_call_operand.vmem [shape: f32[2,48,128], index: 0, kind: input, shape index: {}]
  %s1 = inlined_call_operand.vmem [shape: bf16[3,3,128,128], index: 1, kind: input, shape index: {}]
  %s2 = inlined_call_operand.vmem [shape: f32[3,1,128], index: 2, kind: input, shape index: {}]
  %s3 = inlined_call_operand.vmem [shape: bf16[3,3,128,128], index: 3, kind: input, shape index: {}]
  %s4 = inlined_call_operand.vmem [shape: f32[3,1,128], index: 4, kind: input, shape index: {}]
  %s5 = inlined_call_operand.vmem [shape: f32[2,48,128], index: 5, kind: output, shape index: {}]
  %s6 = sld [smem:[#allocation0]]
  $region57: #{tcn_encoder_forward.1} parent=0
    _
  %s8 = ssub.s32 1, %s6
  %s9 = scalar_select 0, %s8, %s6
  loop: start=0, step=1, limit=8
  $region2: #{tcn_encoder_forward.1} parent=0 // loop_pre_header
    _
  $region3: #{tcn_encoder_forward.1} parent=0 // loop_header
    %s11 = sphi 0, %s15
    %p12 = scmp.ge.s32.totalorder %s11, 8
    %s18 = sphi 0, %s30
    %s19 = sphi 0, %s26
    %s20 = sphi 0, %s18
    %s21 = sphi 0, %s19
    %s22 = sphi 0, %s20
    %s23 = sphi 0, %s21
    %s35 = sphi 0, %s37
    %s38 = sphi 0, %s35
    %s39 = sphi 0, %s38
    %s55 = sphi 0, %s39
    %s59 = sphi 0, %s59
    %s61 = sphi 0, %s59
    %s62 = sphi 0, %s61
    %s76 = sphi 0, %s62
    %s80 = sphi 0, %s80
    %s82 = sphi 0, %s80
    %s83 = sphi 0, %s82
    %s97 = sphi 0, %s83
    %s101 = sphi 0, %s101
    %s103 = sphi 0, %s101
    %s104 = sphi 0, %s103
    %s118 = sphi 0, %s104
    %s122 = sphi 0, %s122
    %s124 = sphi 0, %s122
    %s125 = sphi 0, %s124
    %s139 = sphi 0, %s125
    %s147 = sphi 0, %s149
    %s150 = sphi 0, %s147
    %s151 = sphi 0, %s150
    %s167 = sphi 0, %s151
  $region4: #{tcn_encoder_forward.1} parent=0 // loop_header_branch
    %14 = sbr.rel (%p12) target = $region8
  $region5: #{tcn_encoder_forward.1} parent=0 // loop_body
    %s16 = ssub.s32 %s11, 1
    %s17 = ssub.s32 %s11, 2
    %s24 = sadd.s32 1, %s19
    %p25 = scmp.ge.s32.totalorder %s24, 3
    %s26 = scalar_select %p25, 0, %s24
    %s27 = sadd.s32 1, %s18
    %s28 = scalar_select %p25, %s27, %s18
    %p29 = scmp.ge.s32.totalorder %s28, 2
    %s30 = scalar_select %p29, 0, %s28
    %s31 = ssub.s32 %s18, %s30
    %s32 = ssub.s32 %s19, %s26
    %s33 = sor.u32 %s31, %s32
    %p34 = scmp.eq.s32.totalorder %s33, 0
    %s36 = sadd.s32 %s35, 1
    %s37 = scalar_select %p34, %s35, %s36
    %p40 = pneg %p34
    %p41 = scmp.eq.s32.totalorder %s11, 5
    %p42 = por %p40, %p41
    %p43 = scmp.ne.s32.totalorder %s35, %s38
    %p44 = scmp.eq.s32.totalorder %s11, 0
    %p45 = por %p43, %p44
    %p46 = scmp.ne.s32.totalorder %s35, %s38
    %p47 = scmp.eq.s32.totalorder %s16, 5
    %p48 = por %p46, %p47
    %p49 = scmp.ne.s32.totalorder %s38, %s39
    %p50 = scmp.eq.s32.totalorder %s16, 0
    %p51 = por %p49, %p50
    %p52 = scmp.ne.s32.totalorder %s38, %s39
    %p53 = scmp.eq.s32.totalorder %s17, 5
    %p54 = por %p52, %p53
    %p56 = scmp.ne.s32.totalorder %s39, %s55
    %p57 = scmp.eq.s32.totalorder %s17, 0
    %p58 = por %p56, %p57
    %s60 = sadd.s32 %s59, 1
    %p63 = scmp.eq.s32.totalorder %s11, 5
    %p64 = scmp.ne.s32.totalorder %s59, %s61
    %p65 = scmp.eq.s32.totalorder %s11, 0
    %p66 = por %p64, %p65
    %p67 = scmp.ne.s32.totalorder %s59, %s61
    %p68 = scmp.eq.s32.totalorder %s16, 5
    %p69 = por %p67, %p68
    %p70 = scmp.ne.s32.totalorder %s61, %s62
    %p71 = scmp.eq.s32.totalorder %s16, 0
    %p72 = por %p70, %p71
    %p73 = scmp.ne.s32.totalorder %s61, %s62
    %p74 = scmp.eq.s32.totalorder %s17, 5
    %p75 = por %p73, %p74
    %p77 = scmp.ne.s32.totalorder %s62, %s76
    %p78 = scmp.eq.s32.totalorder %s17, 0
    %p79 = por %p77, %p78
    %s81 = sadd.s32 %s80, 1
    %p84 = scmp.eq.s32.totalorder %s11, 5
    %p85 = scmp.ne.s32.totalorder %s80, %s82
    %p86 = scmp.eq.s32.totalorder %s11, 0
    %p87 = por %p85, %p86
    %p88 = scmp.ne.s32.totalorder %s80, %s82
    %p89 = scmp.eq.s32.totalorder %s16, 5
    %p90 = por %p88, %p89
    %p91 = scmp.ne.s32.totalorder %s82, %s83
    %p92 = scmp.eq.s32.totalorder %s16, 0
    %p93 = por %p91, %p92
    %p94 = scmp.ne.s32.totalorder %s82, %s83
    %p95 = scmp.eq.s32.totalorder %s17, 5
    %p96 = por %p94, %p95
    %p98 = scmp.ne.s32.totalorder %s83, %s97
    %p99 = scmp.eq.s32.totalorder %s17, 0
    %p100 = por %p98, %p99
    %s102 = sadd.s32 %s101, 1
    %p105 = scmp.eq.s32.totalorder %s11, 5
    %p106 = scmp.ne.s32.totalorder %s101, %s103
    %p107 = scmp.eq.s32.totalorder %s11, 0
    %p108 = por %p106, %p107
    %p109 = scmp.ne.s32.totalorder %s101, %s103
    %p110 = scmp.eq.s32.totalorder %s16, 5
    %p111 = por %p109, %p110
    %p112 = scmp.ne.s32.totalorder %s103, %s104
    %p113 = scmp.eq.s32.totalorder %s16, 0
    %p114 = por %p112, %p113
    %p115 = scmp.ne.s32.totalorder %s103, %s104
    %p116 = scmp.eq.s32.totalorder %s17, 5
    %p117 = por %p115, %p116
    %p119 = scmp.ne.s32.totalorder %s104, %s118
    %p120 = scmp.eq.s32.totalorder %s17, 0
    %p121 = por %p119, %p120
    %s123 = sadd.s32 %s122, 1
    %p126 = scmp.eq.s32.totalorder %s11, 5
    %p127 = scmp.ne.s32.totalorder %s122, %s124
    %p128 = scmp.eq.s32.totalorder %s11, 0
    %p129 = por %p127, %p128
    %p130 = scmp.ne.s32.totalorder %s122, %s124
    %p131 = scmp.eq.s32.totalorder %s16, 5
    %p132 = por %p130, %p131
    %p133 = scmp.ne.s32.totalorder %s124, %s125
    %p134 = scmp.eq.s32.totalorder %s16, 0
    %p135 = por %p133, %p134
    %p136 = scmp.ne.s32.totalorder %s124, %s125
    %p137 = scmp.eq.s32.totalorder %s17, 5
    %p138 = por %p136, %p137
    %p140 = scmp.ne.s32.totalorder %s125, %s139
    %p141 = scmp.eq.s32.totalorder %s17, 0
    %p142 = por %p140, %p141
    %s143 = ssub.s32 %s18, %s30
    %s144 = ssub.s32 %s19, %s26
    %s145 = sor.u32 %s143, %s144
    %p146 = scmp.eq.s32.totalorder %s145, 0
    %s148 = sadd.s32 %s147, 1
    %s149 = scalar_select %p146, %s147, %s148
    %p152 = pneg %p146
    %p153 = scmp.eq.s32.totalorder %s11, 5
    %p154 = por %p152, %p153
    %p155 = scmp.ne.s32.totalorder %s147, %s150
    %p156 = scmp.eq.s32.totalorder %s11, 0
    %p157 = por %p155, %p156
    %p158 = scmp.ne.s32.totalorder %s147, %s150
    %p159 = scmp.eq.s32.totalorder %s16, 5
    %p160 = por %p158, %p159
    %p161 = scmp.ne.s32.totalorder %s150, %s151
    %p162 = scmp.eq.s32.totalorder %s16, 0
    %p163 = por %p161, %p162
    %p164 = scmp.ne.s32.totalorder %s150, %s151
    %p165 = scmp.eq.s32.totalorder %s17, 5
    %p166 = por %p164, %p165
    %p168 = scmp.ne.s32.totalorder %s151, %s167
    %p169 = scmp.eq.s32.totalorder %s17, 0
    %p170 = por %p168, %p169
    %p171 = scmp.le.s32.totalorder 1, %s11
    %p172 = scmp.lt.s32.totalorder %s11, 7
    %p173 = pnand %p171, %p172
    %p174 = pneg %p173
    // Predicated region
    $region9: #{tcn_encoder_forward.1} parent=5 // pred_check
      _
    $region10: #{tcn_encoder_forward.1} parent=5 // pred_check_branch
      %176 = sbr.rel (%p173) target = $region12
    $region11: #{tcn_encoder_forward.1} parent=5 // pred_region
      %s177 = ssub.s32 %s11, 1
      // Predicated region
      $region13: #{tcn_encoder_forward.1} parent=11 // pred_check
        %p178 = pneg %p72
      $region14: #{tcn_encoder_forward.1} parent=11 // pred_check_branch
        %180 = sbr.rel (%p178) target = $region16
      $region15: #{tcn_encoder_forward.1} parent=11 // pred_region
        _
      $region16: #{tcn_encoder_forward.1} parent=11 // pred_fallthru
        _
      // Predicated region
      $region17: #{tcn_encoder_forward.1} parent=11 // pred_check
        %p181 = pneg %p93
      $region18: #{tcn_encoder_forward.1} parent=11 // pred_check_branch
        %183 = sbr.rel (%p181) target = $region20
      $region19: #{tcn_encoder_forward.1} parent=11 // pred_region
        _
      $region20: #{tcn_encoder_forward.1} parent=11 // pred_fallthru
        _
      // Predicated region
      $region21: #{tcn_encoder_forward.1} parent=11 // pred_check
        %p184 = pneg %p114
      $region22: #{tcn_encoder_forward.1} parent=11 // pred_check_branch
        %186 = sbr.rel (%p184) target = $region24
      $region23: #{tcn_encoder_forward.1} parent=11 // pred_region
        _
      $region24: #{tcn_encoder_forward.1} parent=11 // pred_fallthru
        _
      // Predicated region
      $region25: #{tcn_encoder_forward.1} parent=11 // pred_check
        %p187 = pneg %p135
      $region26: #{tcn_encoder_forward.1} parent=11 // pred_check_branch
        %189 = sbr.rel (%p187) target = $region28
      $region27: #{tcn_encoder_forward.1} parent=11 // pred_region
        _
      $region28: #{tcn_encoder_forward.1} parent=11 // pred_fallthru
        _
    $region12: #{tcn_encoder_forward.1} parent=5 // pred_fallthru
      _
    %p190 = scmp.lt.s32.totalorder %s11, 6
    // Predicated region
    $region29: #{tcn_encoder_forward.1} parent=5 // pred_check
      %p191 = pneg %p190
    $region30: #{tcn_encoder_forward.1} parent=5 // pred_check_branch
      %193 = sbr.rel (%p191) target = $region32
    $region31: #{tcn_encoder_forward.1} parent=5 // pred_region
      // Predicated region
      $region33: #{tcn_encoder_forward.1} parent=31 // pred_check
        %p194 = pneg %p45
      $region34: #{tcn_encoder_forward.1} parent=31 // pred_check_branch
        %196 = sbr.rel (%p194) target = $region36
      $region35: #{tcn_encoder_forward.1} parent=31 // pred_region
        %s197 = smul.u32 2, %s19
        %p198 = scmp.lt.s32.totalorder %s18, 1
        %s199 = scalar_select %p198, %s18, 1
        %p200 = scmp.lt.s32.totalorder %s197, 5
        %s201 = scalar_select %p200, %s197, 5
        %s202 = smul.addr %s199, 6
        %s203 = sadd.s32 %s201, %s202
        %s204 = smul.addr %s203, 8
        %s205 = scalar_lea.vmem %s0, %s204
        %s206 = smul.u32 2, %s19
      $region36: #{tcn_encoder_forward.1} parent=31 // pred_fallthru
        _
    $region32: #{tcn_encoder_forward.1} parent=5 // pred_fallthru
      _
    %p207 = scmp.le.s32.totalorder 1, %s11
    %p208 = scmp.lt.s32.totalorder %s11, 7
    %p209 = pnand %p207, %p208
    %p210 = pneg %p209
    // Predicated region
    $region37: #{tcn_encoder_forward.1} parent=5 // pred_check
      _
    $region38: #{tcn_encoder_forward.1} parent=5 // pred_check_branch
      %212 = sbr.rel (%p209) target = $region40
    $region39: #{tcn_encoder_forward.1} parent=5 // pred_region
      %s213 = ssub.s32 %s11, 1
      %s214 = smul.u32 2, %s21
      %p215 = scmp.lt.s32.totalorder %s20, 1
      %s216 = scalar_select %p215, %s20, 1
      %p217 = scmp.lt.s32.totalorder %s214, 5
      %s218 = scalar_select %p217, %s214, 5
      %s219 = smul.addr %s216, 6
      %s220 = sadd.s32 %s218, %s219
      %s221 = smul.addr %s220, 8
      %s222 = scalar_lea.vmem %s0, %s221
      %p223 = pneg %p51
      %p224 = pneg %p48
      %p225 = pneg %p72
      %p226 = pneg %p69
      %p227 = pneg %p93
      %p228 = pneg %p90
      %p229 = pneg %p114
      %p230 = pneg %p111
      %p231 = pneg %p135
      %p232 = pneg %p132
      %p233 = pneg %p163
      %p234 = pneg %p160
      %s235 = smul.u32 2, %s21
      %p236 = scmp.lt.s32.totalorder %s20, 1
      %s237 = scalar_select %p236, %s20, 1
      %p238 = scmp.lt.s32.totalorder %s235, 5
      %s239 = scalar_select %p238, %s235, 5
      %s240 = smul.addr %s237, 6
      %s241 = sadd.s32 %s239, %s240
      %s242 = smul.addr %s241, 8
      %s243 = scalar_lea.vmem %s5, %s242
      %s244 = smul.u32 2, %s21
      %p245 = scmp.lt.s32.totalorder %s20, 1
      %s246 = scalar_select %p245, %s20, 1
      %p247 = scmp.lt.s32.totalorder %s244, 5
      %s248 = scalar_select %p247, %s244, 5
      %s249 = smul.addr %s246, 6
      %s250 = sadd.s32 %s248, %s249
      %s251 = smul.addr %s250, 8
      %s252 = scalar_lea.vmem %s0, %s251
      %s253 = smul.u32 2, %s21
      %s254 = smul.u32 2, %s21
      %p255 = scmp.lt.s32.totalorder %s20, 1
      %s256 = scalar_select %p255, %s20, 1
      %p257 = scmp.lt.s32.totalorder %s254, 5
      %s258 = scalar_select %p257, %s254, 5
      %s259 = smul.addr %s256, 6
      %s260 = sadd.s32 %s258, %s259
      %s261 = smul.addr %s260, 8
      %s262 = scalar_lea.vmem %s5, %s261
      %s263 = smul.u32 2, %s21
      %p265 = scmp.eq.s32.totalorder %s21, 0
      // Predicated region
      $region41: #{tcn_encoder_forward.1} parent=39 // pred_check
        %p266 = pneg %p265
      $region42: #{tcn_encoder_forward.1} parent=39 // pred_check_branch
        %268 = sbr.rel (%p266) target = $region44
      $region43: #{tcn_encoder_forward.1} parent=39 // pred_region
        %269 = vst [vmem:[#allocation4] sm:$0xff] 0.0
        %270 = vst [vmem:[#allocation4 + $0x8] sm:$0xff] 0.0
        %271 = vst [vmem:[#allocation4 + $0x10] sm:$0xff] 0.0
        %272 = vst [vmem:[#allocation5] sm:$0xff] 0.0
        %273 = vst [vmem:[#allocation5 + $0x8] sm:$0xff] 0.0
        %274 = vst [vmem:[#allocation5 + $0x10] sm:$0xff] 0.0
      $region44: #{tcn_encoder_forward.1} parent=39 // pred_fallthru
        _
      %v275 = vld [vmem:[%s252] sm:$0xff]
      %v276 = vld [vmem:[%s252 + $0x8] sm:$0xff]
      %277 = vst [vmem:[#allocation2 + $0x8] sm:$0xff] %v275
      %278 = vst [vmem:[#allocation2 + $0x10] sm:$0xff] %v276
      %v279 = vld [vmem:[#allocation4] sm:$0xff]
      %280 = vst [vmem:[#allocation2] sm:$0xff] %v279
      %v281 = vld [vmem:[#allocation2 + $0x10] sm:$0xff]
      %282 = vst [vmem:[#allocation4] sm:$0xff] %v281
      %v283 = vld [vmem:[%s2] sm:$0x1]
      %v285 = vlaneseq
      %v286 = vshrl.u32 %v285, 7
      %v287 = vsub.s32 0, %v286
      %v288 = vrot.slane %v283, %v287
      %v290 = vld [vmem:[#allocation2 + $0x6] sm:$0xff]
      %v291 = vld [vmem:[#allocation2 + $0xe] sm:$0xff]
      %v292 = vpack.c.bf16 %v291, %v290
      %v293 = vld [vmem:[%s1] sm:$0xf]
      %v294 = vld [vmem:[%s1 + $0x4] sm:$0xf]
      %v295 = vld [vmem:[%s1 + $0x8] sm:$0xf]
      %v296 = vld [vmem:[%s1 + $0xc] sm:$0xf]
      %v297 = vld [vmem:[%s1 + $0x10] sm:$0xf]
      %v298 = vld [vmem:[%s1 + $0x14] sm:$0xf]
      %v299 = vld [vmem:[%s1 + $0x18] sm:$0xf]
      %v300 = vld [vmem:[%s1 + $0x1c] sm:$0xf]
      %v301 = vld [vmem:[%s1 + $0x20] sm:$0xf]
      %v302 = vld [vmem:[%s1 + $0x24] sm:$0xf]
      %v303 = vld [vmem:[%s1 + $0x28] sm:$0xf]
      %v304 = vld [vmem:[%s1 + $0x2c] sm:$0xf]
      %v305 = vld [vmem:[%s1 + $0x30] sm:$0xf]
      %v306 = vld [vmem:[%s1 + $0x34] sm:$0xf]
      %v307 = vld [vmem:[%s1 + $0x38] sm:$0xf]
      %v308 = vld [vmem:[%s1 + $0x3c] sm:$0xf]
      %v325 = vunpack.c.l.b16 %v293
      %v326 = vunpack.c.l.b16 %v294
      %v327 = vunpack.c.l.b16 %v295
      %v328 = vunpack.c.l.b16 %v296
      %v329 = vunpack.c.l.b16 %v297
      %v330 = vunpack.c.l.b16 %v298
      %v331 = vunpack.c.l.b16 %v299
      %v332 = vunpack.c.l.b16 %v300
      %v333 = vunpack.c.l.b16 %v301
      %v334 = vunpack.c.l.b16 %v302
      %v335 = vunpack.c.l.b16 %v303
      %v336 = vunpack.c.l.b16 %v304
      %v337 = vunpack.c.l.b16 %v305
      %v338 = vunpack.c.l.b16 %v306
      %v339 = vunpack.c.l.b16 %v307
      %v340 = vunpack.c.l.b16 %v308
      %v341 = vpack.c.b16 %v326, %v325
      %v342 = vpack.c.b16 %v328, %v327
      %v343 = vpack.c.b16 %v330, %v329
      %v344 = vpack.c.b16 %v332, %v331
      %v345 = vpack.c.b16 %v334, %v333
      %v346 = vpack.c.b16 %v336, %v335
      %v347 = vpack.c.b16 %v338, %v337
      %v348 = vpack.c.b16 %v340, %v339
      %357 = vmatprep.subr.bf16.mxu0 0
      %358 = vmatpush1.bf16.msra.mxu0 %v341
      %359 = vmatprep.subr.bf16.mxu0 0
      %360 = vmatpush1.bf16.msra.mxu0 %v342
      %361 = vmatprep.subr.bf16.mxu0 0
      %362 = vmatpush1.bf16.msra.mxu0 %v343
      %363 = vmatprep.subr.bf16.mxu0 0
      %364 = vmatpush1.bf16.msra.mxu0 %v344
      %365 = vmatprep.subr.bf16.mxu0 0
      %366 = vmatpush1.bf16.msra.mxu0 %v345
      %367 = vmatprep.subr.bf16.mxu0 0
      %368 = vmatpush1.bf16.msra.mxu0 %v346
      %369 = vmatprep.subr.bf16.mxu0 0
      %370 = vmatpush1.bf16.msra.mxu0 %v347
      %371 = vmatprep.subr.bf16.mxu0 0
      %372 = vmatpush1.bf16.msra.mxu0 %v348
      %373 = vmatprep.subr.bf16.mxu0 0
      %374 = vmatpush1.bf16.msra.mxu0 0
      %375 = vmatprep.subr.bf16.mxu0 0
      %376 = vmatpush1.bf16.msra.mxu0 0
      %377 = vmatprep.subr.bf16.mxu0 0
      %378 = vmatpush1.bf16.msra.mxu0 0
      %379 = vmatprep.subr.bf16.mxu0 0
      %380 = vmatpush1.bf16.msra.mxu0 0
      %381 = vmatprep.subr.bf16.mxu0 0
      %382 = vmatpush1.bf16.msra.mxu0 0
      %383 = vmatprep.subr.bf16.mxu0 0
      %384 = vmatpush1.bf16.msra.mxu0 0
      %385 = vmatprep.subr.bf16.mxu0 0
      %386 = vmatpush1.bf16.msra.mxu0 0
      %387 = vmatprep.subr.bf16.mxu0 0
      %388 = vmatpush1.bf16.msra.mxu0 0
      %389 = vmatprep.mubr.bf16.mxu0 0
      %390 = vmatmul.mubr.bf16.gmra.mrb[0].mxu0 %v292
      %v391 = vpop.f32.mrb[0].mxu0
      %v392 = vadd.f32 0.0, %v391
      %v393 = vpop.f32.mrb[0].mxu0
      %v394 = vpop.f32.mrb[0].mxu0
      %v395 = vadd.f32 0.0, %v394
      %v396 = vpop.f32.mrb[0].mxu0
      %397 = vdwg.mxu0
      %v398 = vadd.f32 %v288, %v392
      %v399 = vadd.f32 %v288, %v395
      %v400 = vld [vmem:[#allocation2 + $0x7] sm:$0xff]
      %v401 = vld [vmem:[#allocation2 + $0xf] sm:$0xff]
      %v402 = vpack.c.bf16 %v401, %v400
      %s403 = scalar_lea.vmem %s1, 64
      %v404 = vld [vmem:[%s403] sm:$0xf]
      %v405 = vld [vmem:[%s403 + $0x4] sm:$0xf]
      %v406 = vld [vmem:[%s403 + $0x8] sm:$0xf]
      %v407 = vld [vmem:[%s403 + $0xc] sm:$0xf]
      %v408 = vld [vmem:[%s403 + $0x10] sm:$0xf]
      %v409 = vld [vmem:[%s403 + $0x14] sm:$0xf]
      %v410 = vld [vmem:[%s403 + $0x18] sm:$0xf]
      %v411 = vld [vmem:[%s403 + $0x1c] sm:$0xf]
      %v412 = vld [vmem:[%s403 + $0x20] sm:$0xf]
      %v413 = vld [vmem:[%s403 + $0x24] sm:$0xf]
      %v414 = vld [vmem:[%s403 + $0x28] sm:$0xf]
      %v415 = vld [vmem:[%s403 + $0x2c] sm:$0xf]
      %v416 = vld [vmem:[%s403 + $0x30] sm:$0xf]
      %v417 = vld [vmem:[%s403 + $0x34] sm:$0xf]
      %v418 = vld [vmem:[%s403 + $0x38] sm:$0xf]
      %v419 = vld [vmem:[%s403 + $0x3c] sm:$0xf]
      %v436 = vunpack.c.l.b16 %v404
      %v437 = vunpack.c.l.b16 %v405
      %v438 = vunpack.c.l.b16 %v406
      %v439 = vunpack.c.l.b16 %v407
      %v440 = vunpack.c.l.b16 %v408
      %v441 = vunpack.c.l.b16 %v409
      %v442 = vunpack.c.l.b16 %v410
      %v443 = vunpack.c.l.b16 %v411
      %v444 = vunpack.c.l.b16 %v412
      %v445 = vunpack.c.l.b16 %v413
      %v446 = vunpack.c.l.b16 %v414
      %v447 = vunpack.c.l.b16 %v415
      %v448 = vunpack.c.l.b16 %v416
      %v449 = vunpack.c.l.b16 %v417
      %v450 = vunpack.c.l.b16 %v418
      %v451 = vunpack.c.l.b16 %v419
      %v452 = vpack.c.b16 %v437, %v436
      %v453 = vpack.c.b16 %v439, %v438
      %v454 = vpack.c.b16 %v441, %v440
      %v455 = vpack.c.b16 %v443, %v442
      %v456 = vpack.c.b16 %v445, %v444
      %v457 = vpack.c.b16 %v447, %v446
      %v458 = vpack.c.b16 %v449, %v448
      %v459 = vpack.c.b16 %v451, %v450
      %468 = vmatprep.subr.bf16.mxu0 0
      %469 = vmatpush1.bf16.msra.mxu0 %v452
      %470 = vmatprep.subr.bf16.mxu0 0
      %471 = vmatpush1.bf16.msra.mxu0 %v453
      %472 = vmatprep.subr.bf16.mxu0 0
      %473 = vmatpush1.bf16.msra.mxu0 %v454
      %474 = vmatprep.subr.bf16.mxu0 0
      %475 = vmatpush1.bf16.msra.mxu0 %v455
      %476 = vmatprep.subr.bf16.mxu0 0
      %477 = vmatpush1.bf16.msra.mxu0 %v456
      %478 = vmatprep.subr.bf16.mxu0 0
      %479 = vmatpush1.bf16.msra.mxu0 %v457
      %480 = vmatprep.subr.bf16.mxu0 0
      %481 = vmatpush1.bf16.msra.mxu0 %v458
      %482 = vmatprep.subr.bf16.mxu0 0
      %483 = vmatpush1.bf16.msra.mxu0 %v459
      %484 = vmatprep.subr.bf16.mxu0 0
      %485 = vmatpush1.bf16.msra.mxu0 0
      %486 = vmatprep.subr.bf16.mxu0 0
      %487 = vmatpush1.bf16.msra.mxu0 0
      %488 = vmatprep.subr.bf16.mxu0 0
      %489 = vmatpush1.bf16.msra.mxu0 0
      %490 = vmatprep.subr.bf16.mxu0 0
      %491 = vmatpush1.bf16.msra.mxu0 0
      %492 = vmatprep.subr.bf16.mxu0 0
      %493 = vmatpush1.bf16.msra.mxu0 0
      %494 = vmatprep.subr.bf16.mxu0 0
      %495 = vmatpush1.bf16.msra.mxu0 0
      %496 = vmatprep.subr.bf16.mxu0 0
      %497 = vmatpush1.bf16.msra.mxu0 0
      %498 = vmatprep.subr.bf16.mxu0 0
      %499 = vmatpush1.bf16.msra.mxu0 0
      %500 = vmatprep.mubr.bf16.mxu0 0
      %501 = vmatmul.mubr.bf16.gmra.mrb[0].mxu0 %v402
      %v502 = vpop.f32.mrb[0].mxu0
      %v503 = vadd.f32 0.0, %v502
      %v504 = vpop.f32.mrb[0].mxu0
      %v505 = vpop.f32.mrb[0].mxu0
      %v506 = vadd.f32 0.0, %v505
      %v507 = vpop.f32.mrb[0].mxu0
      %508 = vdwg.mxu0
      %v509 = vadd.f32 %v398, %v503
      %v510 = vadd.f32 %v399, %v506
      %v511 = vld [vmem:[#allocation2 + $0x8] sm:$0xff]
      %v512 = vld [vmem:[#allocation2 + $0x10] sm:$0xff]
      %v513 = vpack.c.bf16 %v512, %v511
      %s514 = scalar_lea.vmem %s1, 128
      %v515 = vld [vmem:[%s514] sm:$0xf]
      %v516 = vld [vmem:[%s514 + $0x4] sm:$0xf]
      %v517 = vld [vmem:[%s514 + $0x8] sm:$0xf]
      %v518 = vld [vmem:[%s514 + $0xc] sm:$0xf]
      %v519 = vld [vmem:[%s514 + $0x10] sm:$0xf]
      %v520 = vld [vmem:[%s514 + $0x14] sm:$0xf]
      %v521 = vld [vmem:[%s514 + $0x18] sm:$0xf]
      %v522 = vld [vmem:[%s514 + $0x1c] sm:$0xf]
      %v523 = vld [vmem:[%s514 + $0x20] sm:$0xf]
      %v524 = vld [vmem:[%s514 + $0x24] sm:$0xf]
      %v525 = vld [vmem:[%s514 + $0x28] sm:$0xf]
      %v526 = vld [vmem:[%s514 + $0x2c] sm:$0xf]
      %v527 = vld [vmem:[%s514 + $0x30] sm:$0xf]
      %v528 = vld [vmem:[%s514 + $0x34] sm:$0xf]
      %v529 = vld [vmem:[%s514 + $0x38] sm:$0xf]
      %v530 = vld [vmem:[%s514 + $0x3c] sm:$0xf]
      %v547 = vunpack.c.l.b16 %v515
      %v548 = vunpack.c.l.b16 %v516
      %v549 = vunpack.c.l.b16 %v517
      %v550 = vunpack.c.l.b16 %v518
      %v551 = vunpack.c.l.b16 %v519
      %v552 = vunpack.c.l.b16 %v520
      %v553 = vunpack.c.l.b16 %v521
      %v554 = vunpack.c.l.b16 %v522
      %v555 = vunpack.c.l.b16 %v523
      %v556 = vunpack.c.l.b16 %v524
      %v557 = vunpack.c.l.b16 %v525
      %v558 = vunpack.c.l.b16 %v526
      %v559 = vunpack.c.l.b16 %v527
      %v560 = vunpack.c.l.b16 %v528
      %v561 = vunpack.c.l.b16 %v529
      %v562 = vunpack.c.l.b16 %v530
      %v563 = vpack.c.b16 %v548, %v547
      %v564 = vpack.c.b16 %v550, %v549
      %v565 = vpack.c.b16 %v552, %v551
      %v566 = vpack.c.b16 %v554, %v553
      %v567 = vpack.c.b16 %v556, %v555
      %v568 = vpack.c.b16 %v558, %v557
      %v569 = vpack.c.b16 %v560, %v559
      %v570 = vpack.c.b16 %v562, %v561
      %579 = vmatprep.subr.bf16.mxu0 0
      %580 = vmatpush1.bf16.msra.mxu0 %v563
      %581 = vmatprep.subr.bf16.mxu0 0
      %582 = vmatpush1.bf16.msra.mxu0 %v564
      %583 = vmatprep.subr.bf16.mxu0 0
      %584 = vmatpush1.bf16.msra.mxu0 %v565
      %585 = vmatprep.subr.bf16.mxu0 0
      %586 = vmatpush1.bf16.msra.mxu0 %v566
      %587 = vmatprep.subr.bf16.mxu0 0
      %588 = vmatpush1.bf16.msra.mxu0 %v567
      %589 = vmatprep.subr.bf16.mxu0 0
      %590 = vmatpush1.bf16.msra.mxu0 %v568
      %591 = vmatprep.subr.bf16.mxu0 0
      %592 = vmatpush1.bf16.msra.mxu0 %v569
      %593 = vmatprep.subr.bf16.mxu0 0
      %594 = vmatpush1.bf16.msra.mxu0 %v570
      %595 = vmatprep.subr.bf16.mxu0 0
      %596 = vmatpush1.bf16.msra.mxu0 0
      %597 = vmatprep.subr.bf16.mxu0 0
      %598 = vmatpush1.bf16.msra.mxu0 0
      %599 = vmatprep.subr.bf16.mxu0 0
      %600 = vmatpush1.bf16.msra.mxu0 0
      %601 = vmatprep.subr.bf16.mxu0 0
      %602 = vmatpush1.bf16.msra.mxu0 0
      %603 = vmatprep.subr.bf16.mxu0 0
      %604 = vmatpush1.bf16.msra.mxu0 0
      %605 = vmatprep.subr.bf16.mxu0 0
      %606 = vmatpush1.bf16.msra.mxu0 0
      %607 = vmatprep.subr.bf16.mxu0 0
      %608 = vmatpush1.bf16.msra.mxu0 0
      %609 = vmatprep.subr.bf16.mxu0 0
      %610 = vmatpush1.bf16.msra.mxu0 0
      %611 = vmatprep.mubr.bf16.mxu0 0
      %612 = vmatmul.mubr.bf16.gmra.mrb[0].mxu0 %v513
      %v613 = vpop.f32.mrb[0].mxu0
      %v614 = vadd.f32 0.0, %v613
      %v615 = vpop.f32.mrb[0].mxu0
      %v616 = vpop.f32.mrb[0].mxu0
      %v617 = vadd.f32 0.0, %v616
      %v618 = vpop.f32.mrb[0].mxu0
      %619 = vdwg.mxu0
      %v620 = vadd.f32 %v509, %v614
      %v621 = vadd.f32 %v510, %v617
      %v622 = vmax.f32 %v620, 0.0
      %v623 = vmax.f32 %v621, 0.0
      %v624 = vld [vmem:[#allocation5] sm:$0xff]
      %625 = vst [vmem:[#allocation3] sm:$0xff] %v624
      %626 = vst [vmem:[#allocation3 + $0x8] sm:$0xff] %v622
      %627 = vst [vmem:[#allocation3 + $0x10] sm:$0xff] %v623
      %v628 = vld [vmem:[#allocation3 + $0x10] sm:$0xff]
      %629 = vst [vmem:[#allocation5] sm:$0xff] %v628
      %v630 = vld [vmem:[%s4] sm:$0x1]
      %v632 = vlaneseq
      %v633 = vshrl.u32 %v632, 7
      %v634 = vsub.s32 0, %v633
      %v635 = vrot.slane %v630, %v634
      %v637 = vld [vmem:[#allocation3 + $0x6] sm:$0xff]
      %v638 = vld [vmem:[#allocation3 + $0xe] sm:$0xff]
      %v639 = vpack.c.bf16 %v638, %v637
      %v640 = vld [vmem:[%s3] sm:$0xf]
      %v641 = vld [vmem:[%s3 + $0x4] sm:$0xf]
      %v642 = vld [vmem:[%s3 + $0x8] sm:$0xf]
      %v643 = vld [vmem:[%s3 + $0xc] sm:$0xf]
      %v644 = vld [vmem:[%s3 + $0x10] sm:$0xf]
      %v645 = vld [vmem:[%s3 + $0x14] sm:$0xf]
      %v646 = vld [vmem:[%s3 + $0x18] sm:$0xf]
      %v647 = vld [vmem:[%s3 + $0x1c] sm:$0xf]
      %v648 = vld [vmem:[%s3 + $0x20] sm:$0xf]
      %v649 = vld [vmem:[%s3 + $0x24] sm:$0xf]
      %v650 = vld [vmem:[%s3 + $0x28] sm:$0xf]
      %v651 = vld [vmem:[%s3 + $0x2c] sm:$0xf]
      %v652 = vld [vmem:[%s3 + $0x30] sm:$0xf]
      %v653 = vld [vmem:[%s3 + $0x34] sm:$0xf]
      %v654 = vld [vmem:[%s3 + $0x38] sm:$0xf]
      %v655 = vld [vmem:[%s3 + $0x3c] sm:$0xf]
      %v672 = vunpack.c.l.b16 %v640
      %v673 = vunpack.c.l.b16 %v641
      %v674 = vunpack.c.l.b16 %v642
      %v675 = vunpack.c.l.b16 %v643
      %v676 = vunpack.c.l.b16 %v644
      %v677 = vunpack.c.l.b16 %v645
      %v678 = vunpack.c.l.b16 %v646
      %v679 = vunpack.c.l.b16 %v647
      %v680 = vunpack.c.l.b16 %v648
      %v681 = vunpack.c.l.b16 %v649
      %v682 = vunpack.c.l.b16 %v650
      %v683 = vunpack.c.l.b16 %v651
      %v684 = vunpack.c.l.b16 %v652
      %v685 = vunpack.c.l.b16 %v653
      %v686 = vunpack.c.l.b16 %v654
      %v687 = vunpack.c.l.b16 %v655
      %v688 = vpack.c.b16 %v673, %v672
      %v689 = vpack.c.b16 %v675, %v674
      %v690 = vpack.c.b16 %v677, %v676
      %v691 = vpack.c.b16 %v679, %v678
      %v692 = vpack.c.b16 %v681, %v680
      %v693 = vpack.c.b16 %v683, %v682
      %v694 = vpack.c.b16 %v685, %v684
      %v695 = vpack.c.b16 %v687, %v686
      %704 = vmatprep.subr.bf16.mxu0 0
      %705 = vmatpush1.bf16.msra.mxu0 %v688
      %706 = vmatprep.subr.bf16.mxu0 0
      %707 = vmatpush1.bf16.msra.mxu0 %v689
      %708 = vmatprep.subr.bf16.mxu0 0
      %709 = vmatpush1.bf16.msra.mxu0 %v690
      %710 = vmatprep.subr.bf16.mxu0 0
      %711 = vmatpush1.bf16.msra.mxu0 %v691
      %712 = vmatprep.subr.bf16.mxu0 0
      %713 = vmatpush1.bf16.msra.mxu0 %v692
      %714 = vmatprep.subr.bf16.mxu0 0
      %715 = vmatpush1.bf16.msra.mxu0 %v693
      %716 = vmatprep.subr.bf16.mxu0 0
      %717 = vmatpush1.bf16.msra.mxu0 %v694
      %718 = vmatprep.subr.bf16.mxu0 0
      %719 = vmatpush1.bf16.msra.mxu0 %v695
      %720 = vmatprep.subr.bf16.mxu0 0
      %721 = vmatpush1.bf16.msra.mxu0 0
      %722 = vmatprep.subr.bf16.mxu0 0
      %723 = vmatpush1.bf16.msra.mxu0 0
      %724 = vmatprep.subr.bf16.mxu0 0
      %725 = vmatpush1.bf16.msra.mxu0 0
      %726 = vmatprep.subr.bf16.mxu0 0
      %727 = vmatpush1.bf16.msra.mxu0 0
      %728 = vmatprep.subr.bf16.mxu0 0
      %729 = vmatpush1.bf16.msra.mxu0 0
      %730 = vmatprep.subr.bf16.mxu0 0
      %731 = vmatpush1.bf16.msra.mxu0 0
      %732 = vmatprep.subr.bf16.mxu0 0
      %733 = vmatpush1.bf16.msra.mxu0 0
      %734 = vmatprep.subr.bf16.mxu0 0
      %735 = vmatpush1.bf16.msra.mxu0 0
      %736 = vmatprep.mubr.bf16.mxu0 0
      %737 = vmatmul.mubr.bf16.gmra.mrb[0].mxu0 %v639
      %v738 = vpop.f32.mrb[0].mxu0
      %v739 = vadd.f32 0.0, %v738
      %v740 = vpop.f32.mrb[0].mxu0
      %v741 = vpop.f32.mrb[0].mxu0
      %v742 = vadd.f32 0.0, %v741
      %v743 = vpop.f32.mrb[0].mxu0
      %744 = vdwg.mxu0
      %v745 = vadd.f32 %v635, %v739
      %v746 = vadd.f32 %v635, %v742
      %v747 = vld [vmem:[#allocation3 + $0x7] sm:$0xff]
      %v748 = vld [vmem:[#allocation3 + $0xf] sm:$0xff]
      %v749 = vpack.c.bf16 %v748, %v747
      %s750 = scalar_lea.vmem %s3, 64
      %v751 = vld [vmem:[%s750] sm:$0xf]
      %v752 = vld [vmem:[%s750 + $0x4] sm:$0xf]
      %v753 = vld [vmem:[%s750 + $0x8] sm:$0xf]
      %v754 = vld [vmem:[%s750 + $0xc] sm:$0xf]
      %v755 = vld [vmem:[%s750 + $0x10] sm:$0xf]
      %v756 = vld [vmem:[%s750 + $0x14] sm:$0xf]
      %v757 = vld [vmem:[%s750 + $0x18] sm:$0xf]
      %v758 = vld [vmem:[%s750 + $0x1c] sm:$0xf]
      %v759 = vld [vmem:[%s750 + $0x20] sm:$0xf]
      %v760 = vld [vmem:[%s750 + $0x24] sm:$0xf]
      %v761 = vld [vmem:[%s750 + $0x28] sm:$0xf]
      %v762 = vld [vmem:[%s750 + $0x2c] sm:$0xf]
      %v763 = vld [vmem:[%s750 + $0x30] sm:$0xf]
      %v764 = vld [vmem:[%s750 + $0x34] sm:$0xf]
      %v765 = vld [vmem:[%s750 + $0x38] sm:$0xf]
      %v766 = vld [vmem:[%s750 + $0x3c] sm:$0xf]
      %v783 = vunpack.c.l.b16 %v751
      %v784 = vunpack.c.l.b16 %v752
      %v785 = vunpack.c.l.b16 %v753
      %v786 = vunpack.c.l.b16 %v754
      %v787 = vunpack.c.l.b16 %v755
      %v788 = vunpack.c.l.b16 %v756
      %v789 = vunpack.c.l.b16 %v757
      %v790 = vunpack.c.l.b16 %v758
      %v791 = vunpack.c.l.b16 %v759
      %v792 = vunpack.c.l.b16 %v760
      %v793 = vunpack.c.l.b16 %v761
      %v794 = vunpack.c.l.b16 %v762
      %v795 = vunpack.c.l.b16 %v763
      %v796 = vunpack.c.l.b16 %v764
      %v797 = vunpack.c.l.b16 %v765
      %v798 = vunpack.c.l.b16 %v766
      %v799 = vpack.c.b16 %v784, %v783
      %v800 = vpack.c.b16 %v786, %v785
      %v801 = vpack.c.b16 %v788, %v787
      %v802 = vpack.c.b16 %v790, %v789
      %v803 = vpack.c.b16 %v792, %v791
      %v804 = vpack.c.b16 %v794, %v793
      %v805 = vpack.c.b16 %v796, %v795
      %v806 = vpack.c.b16 %v798, %v797
      %815 = vmatprep.subr.bf16.mxu0 0
      %816 = vmatpush1.bf16.msra.mxu0 %v799
      %817 = vmatprep.subr.bf16.mxu0 0
      %818 = vmatpush1.bf16.msra.mxu0 %v800
      %819 = vmatprep.subr.bf16.mxu0 0
      %820 = vmatpush1.bf16.msra.mxu0 %v801
      %821 = vmatprep.subr.bf16.mxu0 0
      %822 = vmatpush1.bf16.msra.mxu0 %v802
      %823 = vmatprep.subr.bf16.mxu0 0
      %824 = vmatpush1.bf16.msra.mxu0 %v803
      %825 = vmatprep.subr.bf16.mxu0 0
      %826 = vmatpush1.bf16.msra.mxu0 %v804
      %827 = vmatprep.subr.bf16.mxu0 0
      %828 = vmatpush1.bf16.msra.mxu0 %v805
      %829 = vmatprep.subr.bf16.mxu0 0
      %830 = vmatpush1.bf16.msra.mxu0 %v806
      %831 = vmatprep.subr.bf16.mxu0 0
      %832 = vmatpush1.bf16.msra.mxu0 0
      %833 = vmatprep.subr.bf16.mxu0 0
      %834 = vmatpush1.bf16.msra.mxu0 0
      %835 = vmatprep.subr.bf16.mxu0 0
      %836 = vmatpush1.bf16.msra.mxu0 0
      %837 = vmatprep.subr.bf16.mxu0 0
      %838 = vmatpush1.bf16.msra.mxu0 0
      %839 = vmatprep.subr.bf16.mxu0 0
      %840 = vmatpush1.bf16.msra.mxu0 0
      %841 = vmatprep.subr.bf16.mxu0 0
      %842 = vmatpush1.bf16.msra.mxu0 0
      %843 = vmatprep.subr.bf16.mxu0 0
      %844 = vmatpush1.bf16.msra.mxu0 0
      %845 = vmatprep.subr.bf16.mxu0 0
      %846 = vmatpush1.bf16.msra.mxu0 0
      %847 = vmatprep.mubr.bf16.mxu0 0
      %848 = vmatmul.mubr.bf16.gmra.mrb[0].mxu0 %v749
      %v849 = vpop.f32.mrb[0].mxu0
      %v850 = vadd.f32 0.0, %v849
      %v851 = vpop.f32.mrb[0].mxu0
      %v852 = vpop.f32.mrb[0].mxu0
      %v853 = vadd.f32 0.0, %v852
      %v854 = vpop.f32.mrb[0].mxu0
      %855 = vdwg.mxu0
      %v856 = vadd.f32 %v745, %v850
      %v857 = vadd.f32 %v746, %v853
      %v858 = vld [vmem:[#allocation3 + $0x8] sm:$0xff]
      %v859 = vld [vmem:[#allocation3 + $0x10] sm:$0xff]
      %v860 = vpack.c.bf16 %v859, %v858
      %s861 = scalar_lea.vmem %s3, 128
      %v862 = vld [vmem:[%s861] sm:$0xf]
      %v863 = vld [vmem:[%s861 + $0x4] sm:$0xf]
      %v864 = vld [vmem:[%s861 + $0x8] sm:$0xf]
      %v865 = vld [vmem:[%s861 + $0xc] sm:$0xf]
      %v866 = vld [vmem:[%s861 + $0x10] sm:$0xf]
      %v867 = vld [vmem:[%s861 + $0x14] sm:$0xf]
      %v868 = vld [vmem:[%s861 + $0x18] sm:$0xf]
      %v869 = vld [vmem:[%s861 + $0x1c] sm:$0xf]
      %v870 = vld [vmem:[%s861 + $0x20] sm:$0xf]
      %v871 = vld [vmem:[%s861 + $0x24] sm:$0xf]
      %v872 = vld [vmem:[%s861 + $0x28] sm:$0xf]
      %v873 = vld [vmem:[%s861 + $0x2c] sm:$0xf]
      %v874 = vld [vmem:[%s861 + $0x30] sm:$0xf]
      %v875 = vld [vmem:[%s861 + $0x34] sm:$0xf]
      %v876 = vld [vmem:[%s861 + $0x38] sm:$0xf]
      %v877 = vld [vmem:[%s861 + $0x3c] sm:$0xf]
      %v894 = vunpack.c.l.b16 %v862
      %v895 = vunpack.c.l.b16 %v863
      %v896 = vunpack.c.l.b16 %v864
      %v897 = vunpack.c.l.b16 %v865
      %v898 = vunpack.c.l.b16 %v866
      %v899 = vunpack.c.l.b16 %v867
      %v900 = vunpack.c.l.b16 %v868
      %v901 = vunpack.c.l.b16 %v869
      %v902 = vunpack.c.l.b16 %v870
      %v903 = vunpack.c.l.b16 %v871
      %v904 = vunpack.c.l.b16 %v872
      %v905 = vunpack.c.l.b16 %v873
      %v906 = vunpack.c.l.b16 %v874
      %v907 = vunpack.c.l.b16 %v875
      %v908 = vunpack.c.l.b16 %v876
      %v909 = vunpack.c.l.b16 %v877
      %v910 = vpack.c.b16 %v895, %v894
      %v911 = vpack.c.b16 %v897, %v896
      %v912 = vpack.c.b16 %v899, %v898
      %v913 = vpack.c.b16 %v901, %v900
      %v914 = vpack.c.b16 %v903, %v902
      %v915 = vpack.c.b16 %v905, %v904
      %v916 = vpack.c.b16 %v907, %v906
      %v917 = vpack.c.b16 %v909, %v908
      %926 = vmatprep.subr.bf16.mxu0 0
      %927 = vmatpush1.bf16.msra.mxu0 %v910
      %928 = vmatprep.subr.bf16.mxu0 0
      %929 = vmatpush1.bf16.msra.mxu0 %v911
      %930 = vmatprep.subr.bf16.mxu0 0
      %931 = vmatpush1.bf16.msra.mxu0 %v912
      %932 = vmatprep.subr.bf16.mxu0 0
      %933 = vmatpush1.bf16.msra.mxu0 %v913
      %934 = vmatprep.subr.bf16.mxu0 0
      %935 = vmatpush1.bf16.msra.mxu0 %v914
      %936 = vmatprep.subr.bf16.mxu0 0
      %937 = vmatpush1.bf16.msra.mxu0 %v915
      %938 = vmatprep.subr.bf16.mxu0 0
      %939 = vmatpush1.bf16.msra.mxu0 %v916
      %940 = vmatprep.subr.bf16.mxu0 0
      %941 = vmatpush1.bf16.msra.mxu0 %v917
      %942 = vmatprep.subr.bf16.mxu0 0
      %943 = vmatpush1.bf16.msra.mxu0 0
      %944 = vmatprep.subr.bf16.mxu0 0
      %945 = vmatpush1.bf16.msra.mxu0 0
      %946 = vmatprep.subr.bf16.mxu0 0
      %947 = vmatpush1.bf16.msra.mxu0 0
      %948 = vmatprep.subr.bf16.mxu0 0
      %949 = vmatpush1.bf16.msra.mxu0 0
      %950 = vmatprep.subr.bf16.mxu0 0
      %951 = vmatpush1.bf16.msra.mxu0 0
      %952 = vmatprep.subr.bf16.mxu0 0
      %953 = vmatpush1.bf16.msra.mxu0 0
      %954 = vmatprep.subr.bf16.mxu0 0
      %955 = vmatpush1.bf16.msra.mxu0 0
      %956 = vmatprep.subr.bf16.mxu0 0
      %957 = vmatpush1.bf16.msra.mxu0 0
      %958 = vmatprep.mubr.bf16.mxu0 0
      %959 = vmatmul.mubr.bf16.gmra.mrb[0].mxu0 %v860
      %v960 = vpop.f32.mrb[0].mxu0
      %v961 = vadd.f32 0.0, %v960
      %v962 = vpop.f32.mrb[0].mxu0
      %v963 = vpop.f32.mrb[0].mxu0
      %v964 = vadd.f32 0.0, %v963
      %v965 = vpop.f32.mrb[0].mxu0
      %966 = vdwg.mxu0
      %v967 = vadd.f32 %v856, %v961
      %v968 = vadd.f32 %v857, %v964
      %v969 = vmax.f32 %v967, 0.0
      %v970 = vmax.f32 %v968, 0.0
      %v971 = vld [vmem:[#allocation2 + $0x8] sm:$0xff]
      %v972 = vld [vmem:[#allocation2 + $0x10] sm:$0xff]
      %v973 = vadd.f32 %v969, %v971
      %v974 = vadd.f32 %v970, %v972
      %v975 = vmax.f32 %v973, 0.0
      %v976 = vmax.f32 %v974, 0.0
      %977 = vst [vmem:[#allocation2 + $0x8] sm:$0xff] %v975
      %978 = vst [vmem:[#allocation2 + $0x10] sm:$0xff] %v976
      %s979 = scalar_lea.vmem [#allocation4], 8
      %v980 = vld [vmem:[%s979] sm:$0xff]
      %981 = vst [vmem:[#allocation2] sm:$0xff] %v980
      %v982 = vld [vmem:[#allocation2 + $0x10] sm:$0xff]
      %983 = vst [vmem:[%s979] sm:$0xff] %v982
      %s984 = scalar_lea.vmem %s2, 1
      %v985 = vld [vmem:[%s984] sm:$0x1]
      %v987 = vlaneseq
      %v988 = vshrl.u32 %v987, 7
      %v989 = vsub.s32 0, %v988
      %v990 = vrot.slane %v985, %v989
      %v992 = vld [vmem:[#allocation2 + $0x4] sm:$0xff]
      %v993 = vld [vmem:[#allocation2 + $0xc] sm:$0xff]
      %v994 = vpack.c.bf16 %v993, %v992
      %s995 = scalar_lea.vmem %s1, 192
      %v996 = vld [vmem:[%s995] sm:$0xf]
      %v997 = vld [vmem:[%s995 + $0x4] sm:$0xf]
      %v998 = vld [vmem:[%s995 + $0x8] sm:$0xf]
      %v999 = vld [vmem:[%s995 + $0xc] sm:$0xf]
      %v1000 = vld [vmem:[%s995 + $0x10] sm:$0xf]
      %v1001 = vld [vmem:[%s995 + $0x14] sm:$0xf]
      %v1002 = vld [vmem:[%s995 + $0x18] sm:$0xf]
      %v1003 = vld [vmem:[%s995 + $0x1c] sm:$0xf]
      %v1004 = vld [vmem:[%s995 + $0x20] sm:$0xf]
      %v1005 = vld [vmem:[%s995 + $0x24] sm:$0xf]
      %v1006 = vld [vmem:[%s995 + $0x28] sm:$0xf]
      %v1007 = vld [vmem:[%s995 + $0x2c] sm:$0xf]
      %v1008 = vld [vmem:[%s995 + $0x30] sm:$0xf]
      %v1009 = vld [vmem:[%s995 + $0x34] sm:$0xf]
      %v1010 = vld [vmem:[%s995 + $0x38] sm:$0xf]
      %v1011 = vld [vmem:[%s995 + $0x3c] sm:$0xf]
      %v1028 = vunpack.c.l.b16 %v996
      %v1029 = vunpack.c.l.b16 %v997
      %v1030 = vunpack.c.l.b16 %v998
      %v1031 = vunpack.c.l.b16 %v999
      %v1032 = vunpack.c.l.b16 %v1000
      %v1033 = vunpack.c.l.b16 %v1001
      %v1034 = vunpack.c.l.b16 %v1002
      %v1035 = vunpack.c.l.b16 %v1003
      %v1036 = vunpack.c.l.b16 %v1004
      %v1037 = vunpack.c.l.b16 %v1005
      %v1038 = vunpack.c.l.b16 %v1006
      %v1039 = vunpack.c.l.b16 %v1007
      %v1040 = vunpack.c.l.b16 %v1008
      %v1041 = vunpack.c.l.b16 %v1009
      %v1042 = vunpack.c.l.b16 %v1010
      %v1043 = vunpack.c.l.b16 %v1011
      %v1044 = vpack.c.b16 %v1029, %v1028
      %v1045 = vpack.c.b16 %v1031, %v1030
      %v1046 = vpack.c.b16 %v1033, %v1032
      %v1047 = vpack.c.b16 %v1035, %v1034
      %v1048 = vpack.c.b16 %v1037, %v1036
      %v1049 = vpack.c.b16 %v1039, %v1038
      %v1050 = vpack.c.b16 %v1041, %v1040
      %v1051 = vpack.c.b16 %v1043, %v1042
      %1060 = vmatprep.subr.bf16.mxu0 0
      %1061 = vmatpush1.bf16.msra.mxu0 %v1044
      %1062 = vmatprep.subr.bf16.mxu0 0
      %1063 = vmatpush1.bf16.msra.mxu0 %v1045
      %1064 = vmatprep.subr.bf16.mxu0 0
      %1065 = vmatpush1.bf16.msra.mxu0 %v1046
      %1066 = vmatprep.subr.bf16.mxu0 0
      %1067 = vmatpush1.bf16.msra.mxu0 %v1047
      %1068 = vmatprep.subr.bf16.mxu0 0
      %1069 = vmatpush1.bf16.msra.mxu0 %v1048
      %1070 = vmatprep.subr.bf16.mxu0 0
      %1071 = vmatpush1.bf16.msra.mxu0 %v1049
      %1072 = vmatprep.subr.bf16.mxu0 0
      %1073 = vmatpush1.bf16.msra.mxu0 %v1050
      %1074 = vmatprep.subr.bf16.mxu0 0
      %1075 = vmatpush1.bf16.msra.mxu0 %v1051
      %1076 = vmatprep.subr.bf16.mxu0 0
      %1077 = vmatpush1.bf16.msra.mxu0 0
      %1078 = vmatprep.subr.bf16.mxu0 0
      %1079 = vmatpush1.bf16.msra.mxu0 0
      %1080 = vmatprep.subr.bf16.mxu0 0
      %1081 = vmatpush1.bf16.msra.mxu0 0
      %1082 = vmatprep.subr.bf16.mxu0 0
      %1083 = vmatpush1.bf16.msra.mxu0 0
      %1084 = vmatprep.subr.bf16.mxu0 0
      %1085 = vmatpush1.bf16.msra.mxu0 0
      %1086 = vmatprep.subr.bf16.mxu0 0
      %1087 = vmatpush1.bf16.msra.mxu0 0
      %1088 = vmatprep.subr.bf16.mxu0 0
      %1089 = vmatpush1.bf16.msra.mxu0 0
      %1090 = vmatprep.subr.bf16.mxu0 0
      %1091 = vmatpush1.bf16.msra.mxu0 0
      %1092 = vmatprep.mubr.bf16.mxu0 0
      %1093 = vmatmul.mubr.bf16.gmra.mrb[0].mxu0 %v994
      %v1094 = vpop.f32.mrb[0].mxu0
      %v1095 = vadd.f32 0.0, %v1094
      %v1096 = vpop.f32.mrb[0].mxu0
      %v1097 = vpop.f32.mrb[0].mxu0
      %v1098 = vadd.f32 0.0, %v1097
      %v1099 = vpop.f32.mrb[0].mxu0
      %1100 = vdwg.mxu0
      %v1101 = vadd.f32 %v990, %v1095
      %v1102 = vadd.f32 %v990, %v1098
      %v1103 = vld [vmem:[#allocation2 + $0x6] sm:$0xff]
      %v1104 = vld [vmem:[#allocation2 + $0xe] sm:$0xff]
      %v1105 = vpack.c.bf16 %v1104, %v1103
      %s1106 = scalar_lea.vmem %s1, 256
      %v1107 = vld [vmem:[%s1106] sm:$0xf]
      %v1108 = vld [vmem:[%s1106 + $0x4] sm:$0xf]
      %v1109 = vld [vmem:[%s1106 + $0x8] sm:$0xf]
      %v1110 = vld [vmem:[%s1106 + $0xc] sm:$0xf]
      %v1111 = vld [vmem:[%s1106 + $0x10] sm:$0xf]
      %v1112 = vld [vmem:[%s1106 + $0x14] sm:$0xf]
      %v1113 = vld [vmem:[%s1106 + $0x18] sm:$0xf]
      %v1114 = vld [vmem:[%s1106 + $0x1c] sm:$0xf]
      %v1115 = vld [vmem:[%s1106 + $0x20] sm:$0xf]
      %v1116 = vld [vmem:[%s1106 + $0x24] sm:$0xf]
      %v1117 = vld [vmem:[%s1106 + $0x28] sm:$0xf]
      %v1118 = vld [vmem:[%s1106 + $0x2c] sm:$0xf]
      %v1119 = vld [vmem:[%s1106 + $0x30] sm:$0xf]
      %v1120 = vld [vmem:[%s1106 + $0x34] sm:$0xf]
      %v1121 = vld [vmem:[%s1106 + $0x38] sm:$0xf]
      %v1122 = vld [vmem:[%s1106 + $0x3c] sm:$0xf]
      %v1139 = vunpack.c.l.b16 %v1107
      %v1140 = vunpack.c.l.b16 %v1108
      %v1141 = vunpack.c.l.b16 %v1109
      %v1142 = vunpack.c.l.b16 %v1110
      %v1143 = vunpack.c.l.b16 %v1111
      %v1144 = vunpack.c.l.b16 %v1112
      %v1145 = vunpack.c.l.b16 %v1113
      %v1146 = vunpack.c.l.b16 %v1114
      %v1147 = vunpack.c.l.b16 %v1115
      %v1148 = vunpack.c.l.b16 %v1116
      %v1149 = vunpack.c.l.b16 %v1117
      %v1150 = vunpack.c.l.b16 %v1118
      %v1151 = vunpack.c.l.b16 %v1119
      %v1152 = vunpack.c.l.b16 %v1120
      %v1153 = vunpack.c.l.b16 %v1121
      %v1154 = vunpack.c.l.b16 %v1122
      %v1155 = vpack.c.b16 %v1140, %v1139
      %v1156 = vpack.c.b16 %v1142, %v1141
      %v1157 = vpack.c.b16 %v1144, %v1143
      %v1158 = vpack.c.b16 %v1146, %v1145
      %v1159 = vpack.c.b16 %v1148, %v1147
      %v1160 = vpack.c.b16 %v1150, %v1149
      %v1161 = vpack.c.b16 %v1152, %v1151
      %v1162 = vpack.c.b16 %v1154, %v1153
      %1171 = vmatprep.subr.bf16.mxu0 0
      %1172 = vmatpush1.bf16.msra.mxu0 %v1155
      %1173 = vmatprep.subr.bf16.mxu0 0
      %1174 = vmatpush1.bf16.msra.mxu0 %v1156
      %1175 = vmatprep.subr.bf16.mxu0 0
      %1176 = vmatpush1.bf16.msra.mxu0 %v1157
      %1177 = vmatprep.subr.bf16.mxu0 0
      %1178 = vmatpush1.bf16.msra.mxu0 %v1158
      %1179 = vmatprep.subr.bf16.mxu0 0
      %1180 = vmatpush1.bf16.msra.mxu0 %v1159
      %1181 = vmatprep.subr.bf16.mxu0 0
      %1182 = vmatpush1.bf16.msra.mxu0 %v1160
      %1183 = vmatprep.subr.bf16.mxu0 0
      %1184 = vmatpush1.bf16.msra.mxu0 %v1161
      %1185 = vmatprep.subr.bf16.mxu0 0
      %1186 = vmatpush1.bf16.msra.mxu0 %v1162
      %1187 = vmatprep.subr.bf16.mxu0 0
      %1188 = vmatpush1.bf16.msra.mxu0 0
      %1189 = vmatprep.subr.bf16.mxu0 0
      %1190 = vmatpush1.bf16.msra.mxu0 0
      %1191 = vmatprep.subr.bf16.mxu0 0
      %1192 = vmatpush1.bf16.msra.mxu0 0
      %1193 = vmatprep.subr.bf16.mxu0 0
      %1194 = vmatpush1.bf16.msra.mxu0 0
      %1195 = vmatprep.subr.bf16.mxu0 0
      %1196 = vmatpush1.bf16.msra.mxu0 0
      %1197 = vmatprep.subr.bf16.mxu0 0
      %1198 = vmatpush1.bf16.msra.mxu0 0
      %1199 = vmatprep.subr.bf16.mxu0 0
      %1200 = vmatpush1.bf16.msra.mxu0 0
      %1201 = vmatprep.subr.bf16.mxu0 0
      %1202 = vmatpush1.bf16.msra.mxu0 0
      %1203 = vmatprep.mubr.bf16.mxu0 0
      %1204 = vmatmul.mubr.bf16.gmra.mrb[0].mxu0 %v1105
      %v1205 = vpop.f32.mrb[0].mxu0
      %v1206 = vadd.f32 0.0, %v1205
      %v1207 = vpop.f32.mrb[0].mxu0
      %v1208 = vpop.f32.mrb[0].mxu0
      %v1209 = vadd.f32 0.0, %v1208
      %v1210 = vpop.f32.mrb[0].mxu0
      %1211 = vdwg.mxu0
      %v1212 = vadd.f32 %v1101, %v1206
      %v1213 = vadd.f32 %v1102, %v1209
      %v1214 = vld [vmem:[#allocation2 + $0x8] sm:$0xff]
      %v1215 = vld [vmem:[#allocation2 + $0x10] sm:$0xff]
      %v1216 = vpack.c.bf16 %v1215, %v1214
      %s1217 = scalar_lea.vmem %s1, 320
      %v1218 = vld [vmem:[%s1217] sm:$0xf]
      %v1219 = vld [vmem:[%s1217 + $0x4] sm:$0xf]
      %v1220 = vld [vmem:[%s1217 + $0x8] sm:$0xf]
      %v1221 = vld [vmem:[%s1217 + $0xc] sm:$0xf]
      %v1222 = vld [vmem:[%s1217 + $0x10] sm:$0xf]
      %v1223 = vld [vmem:[%s1217 + $0x14] sm:$0xf]
      %v1224 = vld [vmem:[%s1217 + $0x18] sm:$0xf]
      %v1225 = vld [vmem:[%s1217 + $0x1c] sm:$0xf]
      %v1226 = vld [vmem:[%s1217 + $0x20] sm:$0xf]
      %v1227 = vld [vmem:[%s1217 + $0x24] sm:$0xf]
      %v1228 = vld [vmem:[%s1217 + $0x28] sm:$0xf]
      %v1229 = vld [vmem:[%s1217 + $0x2c] sm:$0xf]
      %v1230 = vld [vmem:[%s1217 + $0x30] sm:$0xf]
      %v1231 = vld [vmem:[%s1217 + $0x34] sm:$0xf]
      %v1232 = vld [vmem:[%s1217 + $0x38] sm:$0xf]
      %v1233 = vld [vmem:[%s1217 + $0x3c] sm:$0xf]
      %v1250 = vunpack.c.l.b16 %v1218
      %v1251 = vunpack.c.l.b16 %v1219
      %v1252 = vunpack.c.l.b16 %v1220
      %v1253 = vunpack.c.l.b16 %v1221
      %v1254 = vunpack.c.l.b16 %v1222
      %v1255 = vunpack.c.l.b16 %v1223
      %v1256 = vunpack.c.l.b16 %v1224
      %v1257 = vunpack.c.l.b16 %v1225
      %v1258 = vunpack.c.l.b16 %v1226
      %v1259 = vunpack.c.l.b16 %v1227
      %v1260 = vunpack.c.l.b16 %v1228
      %v1261 = vunpack.c.l.b16 %v1229
      %v1262 = vunpack.c.l.b16 %v1230
      %v1263 = vunpack.c.l.b16 %v1231
      %v1264 = vunpack.c.l.b16 %v1232
      %v1265 = vunpack.c.l.b16 %v1233
      %v1266 = vpack.c.b16 %v1251, %v1250
      %v1267 = vpack.c.b16 %v1253, %v1252
      %v1268 = vpack.c.b16 %v1255, %v1254
      %v1269 = vpack.c.b16 %v1257, %v1256
      %v1270 = vpack.c.b16 %v1259, %v1258
      %v1271 = vpack.c.b16 %v1261, %v1260
      %v1272 = vpack.c.b16 %v1263, %v1262
      %v1273 = vpack.c.b16 %v1265, %v1264
      %1282 = vmatprep.subr.bf16.mxu0 0
      %1283 = vmatpush1.bf16.msra.mxu0 %v1266
      %1284 = vmatprep.subr.bf16.mxu0 0
      %1285 = vmatpush1.bf16.msra.mxu0 %v1267
      %1286 = vmatprep.subr.bf16.mxu0 0
      %1287 = vmatpush1.bf16.msra.mxu0 %v1268
      %1288 = vmatprep.subr.bf16.mxu0 0
      %1289 = vmatpush1.bf16.msra.mxu0 %v1269
      %1290 = vmatprep.subr.bf16.mxu0 0
      %1291 = vmatpush1.bf16.msra.mxu0 %v1270
      %1292 = vmatprep.subr.bf16.mxu0 0
      %1293 = vmatpush1.bf16.msra.mxu0 %v1271
      %1294 = vmatprep.subr.bf16.mxu0 0
      %1295 = vmatpush1.bf16.msra.mxu0 %v1272
      %1296 = vmatprep.subr.bf16.mxu0 0
      %1297 = vmatpush1.bf16.msra.mxu0 %v1273
      %1298 = vmatprep.subr.bf16.mxu0 0
      %1299 = vmatpush1.bf16.msra.mxu0 0
      %1300 = vmatprep.subr.bf16.mxu0 0
      %1301 = vmatpush1.bf16.msra.mxu0 0
      %1302 = vmatprep.subr.bf16.mxu0 0
      %1303 = vmatpush1.bf16.msra.mxu0 0
      %1304 = vmatprep.subr.bf16.mxu0 0
      %1305 = vmatpush1.bf16.msra.mxu0 0
      %1306 = vmatprep.subr.bf16.mxu0 0
      %1307 = vmatpush1.bf16.msra.mxu0 0
      %1308 = vmatprep.subr.bf16.mxu0 0
      %1309 = vmatpush1.bf16.msra.mxu0 0
      %1310 = vmatprep.subr.bf16.mxu0 0
      %1311 = vmatpush1.bf16.msra.mxu0 0
      %1312 = vmatprep.subr.bf16.mxu0 0
      %1313 = vmatpush1.bf16.msra.mxu0 0
      %1314 = vmatprep.mubr.bf16.mxu0 0
      %1315 = vmatmul.mubr.bf16.gmra.mrb[0].mxu0 %v1216
      %v1316 = vpop.f32.mrb[0].mxu0
      %v1317 = vadd.f32 0.0, %v1316
      %v1318 = vpop.f32.mrb[0].mxu0
      %v1319 = vpop.f32.mrb[0].mxu0
      %v1320 = vadd.f32 0.0, %v1319
      %v1321 = vpop.f32.mrb[0].mxu0
      %1322 = vdwg.mxu0
      %v1323 = vadd.f32 %v1212, %v1317
      %v1324 = vadd.f32 %v1213, %v1320
      %v1325 = vmax.f32 %v1323, 0.0
      %v1326 = vmax.f32 %v1324, 0.0
      %s1327 = scalar_lea.vmem [#allocation5], 8
      %v1328 = vld [vmem:[%s1327] sm:$0xff]
      %1329 = vst [vmem:[#allocation3] sm:$0xff] %v1328
      %1330 = vst [vmem:[#allocation3 + $0x8] sm:$0xff] %v1325
      %1331 = vst [vmem:[#allocation3 + $0x10] sm:$0xff] %v1326
      %v1332 = vld [vmem:[#allocation3 + $0x10] sm:$0xff]
      %1333 = vst [vmem:[%s1327] sm:$0xff] %v1332
      %s1334 = scalar_lea.vmem %s4, 1
      %v1335 = vld [vmem:[%s1334] sm:$0x1]
      %v1337 = vlaneseq
      %v1338 = vshrl.u32 %v1337, 7
      %v1339 = vsub.s32 0, %v1338
      %v1340 = vrot.slane %v1335, %v1339
      %v1342 = vld [vmem:[#allocation3 + $0x4] sm:$0xff]
      %v1343 = vld [vmem:[#allocation3 + $0xc] sm:$0xff]
      %v1344 = vpack.c.bf16 %v1343, %v1342
      %s1345 = scalar_lea.vmem %s3, 192
      %v1346 = vld [vmem:[%s1345] sm:$0xf]
      %v1347 = vld [vmem:[%s1345 + $0x4] sm:$0xf]
      %v1348 = vld [vmem:[%s1345 + $0x8] sm:$0xf]
      %v1349 = vld [vmem:[%s1345 + $0xc] sm:$0xf]
      %v1350 = vld [vmem:[%s1345 + $0x10] sm:$0xf]
      %v1351 = vld [vmem:[%s1345 + $0x14] sm:$0xf]
      %v1352 = vld [vmem:[%s1345 + $0x18] sm:$0xf]
      %v1353 = vld [vmem:[%s1345 + $0x1c] sm:$0xf]
      %v1354 = vld [vmem:[%s1345 + $0x20] sm:$0xf]
      %v1355 = vld [vmem:[%s1345 + $0x24] sm:$0xf]
      %v1356 = vld [vmem:[%s1345 + $0x28] sm:$0xf]
      %v1357 = vld [vmem:[%s1345 + $0x2c] sm:$0xf]
      %v1358 = vld [vmem:[%s1345 + $0x30] sm:$0xf]
      %v1359 = vld [vmem:[%s1345 + $0x34] sm:$0xf]
      %v1360 = vld [vmem:[%s1345 + $0x38] sm:$0xf]
      %v1361 = vld [vmem:[%s1345 + $0x3c] sm:$0xf]
      %v1378 = vunpack.c.l.b16 %v1346
      %v1379 = vunpack.c.l.b16 %v1347
      %v1380 = vunpack.c.l.b16 %v1348
      %v1381 = vunpack.c.l.b16 %v1349
      %v1382 = vunpack.c.l.b16 %v1350
      %v1383 = vunpack.c.l.b16 %v1351
      %v1384 = vunpack.c.l.b16 %v1352
      %v1385 = vunpack.c.l.b16 %v1353
      %v1386 = vunpack.c.l.b16 %v1354
      %v1387 = vunpack.c.l.b16 %v1355
      %v1388 = vunpack.c.l.b16 %v1356
      %v1389 = vunpack.c.l.b16 %v1357
      %v1390 = vunpack.c.l.b16 %v1358
      %v1391 = vunpack.c.l.b16 %v1359
      %v1392 = vunpack.c.l.b16 %v1360
      %v1393 = vunpack.c.l.b16 %v1361
      %v1394 = vpack.c.b16 %v1379, %v1378
      %v1395 = vpack.c.b16 %v1381, %v1380
      %v1396 = vpack.c.b16 %v1383, %v1382
      %v1397 = vpack.c.b16 %v1385, %v1384
      %v1398 = vpack.c.b16 %v1387, %v1386
      %v1399 = vpack.c.b16 %v1389, %v1388
      %v1400 = vpack.c.b16 %v1391, %v1390
      %v1401 = vpack.c.b16 %v1393, %v1392
      %1410 = vmatprep.subr.bf16.mxu0 0
      %1411 = vmatpush1.bf16.msra.mxu0 %v1394
      %1412 = vmatprep.subr.bf16.mxu0 0
      %1413 = vmatpush1.bf16.msra.mxu0 %v1395
      %1414 = vmatprep.subr.bf16.mxu0 0
      %1415 = vmatpush1.bf16.msra.mxu0 %v1396
      %1416 = vmatprep.subr.bf16.mxu0 0
      %1417 = vmatpush1.bf16.msra.mxu0 %v1397
      %1418 = vmatprep.subr.bf16.mxu0 0
      %1419 = vmatpush1.bf16.msra.mxu0 %v1398
      %1420 = vmatprep.subr.bf16.mxu0 0
      %1421 = vmatpush1.bf16.msra.mxu0 %v1399
      %1422 = vmatprep.subr.bf16.mxu0 0
      %1423 = vmatpush1.bf16.msra.mxu0 %v1400
      %1424 = vmatprep.subr.bf16.mxu0 0
      %1425 = vmatpush1.bf16.msra.mxu0 %v1401
      %1426 = vmatprep.subr.bf16.mxu0 0
      %1427 = vmatpush1.bf16.msra.mxu0 0
      %1428 = vmatprep.subr.bf16.mxu0 0
      %1429 = vmatpush1.bf16.msra.mxu0 0
      %1430 = vmatprep.subr.bf16.mxu0 0
      %1431 = vmatpush1.bf16.msra.mxu0 0
      %1432 = vmatprep.subr.bf16.mxu0 0
      %1433 = vmatpush1.bf16.msra.mxu0 0
      %1434 = vmatprep.subr.bf16.mxu0 0
      %1435 = vmatpush1.bf16.msra.mxu0 0
      %1436 = vmatprep.subr.bf16.mxu0 0
      %1437 = vmatpush1.bf16.msra.mxu0 0
      %1438 = vmatprep.subr.bf16.mxu0 0
      %1439 = vmatpush1.bf16.msra.mxu0 0
      %1440 = vmatprep.subr.bf16.mxu0 0
      %1441 = vmatpush1.bf16.msra.mxu0 0
      %1442 = vmatprep.mubr.bf16.mxu0 0
      %1443 = vmatmul.mubr.bf16.gmra.mrb[0].mxu0 %v1344
      %v1444 = vpop.f32.mrb[0].mxu0
      %v1445 = vadd.f32 0.0, %v1444
      %v1446 = vpop.f32.mrb[0].mxu0
      %v1447 = vpop.f32.mrb[0].mxu0
      %v1448 = vadd.f32 0.0, %v1447
      %v1449 = vpop.f32.mrb[0].mxu0
      %1450 = vdwg.mxu0
      %v1451 = vadd.f32 %v1340, %v1445
      %v1452 = vadd.f32 %v1340, %v1448
      %v1453 = vld [vmem:[#allocation3 + $0x6] sm:$0xff]
      %v1454 = vld [vmem:[#allocation3 + $0xe] sm:$0xff]
      %v1455 = vpack.c.bf16 %v1454, %v1453
      %s1456 = scalar_lea.vmem %s3, 256
      %v1457 = vld [vmem:[%s1456] sm:$0xf]
      %v1458 = vld [vmem:[%s1456 + $0x4] sm:$0xf]
      %v1459 = vld [vmem:[%s1456 + $0x8] sm:$0xf]
      %v1460 = vld [vmem:[%s1456 + $0xc] sm:$0xf]
      %v1461 = vld [vmem:[%s1456 + $0x10] sm:$0xf]
      %v1462 = vld [vmem:[%s1456 + $0x14] sm:$0xf]
      %v1463 = vld [vmem:[%s1456 + $0x18] sm:$0xf]
      %v1464 = vld [vmem:[%s1456 + $0x1c] sm:$0xf]
      %v1465 = vld [vmem:[%s1456 + $0x20] sm:$0xf]
      %v1466 = vld [vmem:[%s1456 + $0x24] sm:$0xf]
      %v1467 = vld [vmem:[%s1456 + $0x28] sm:$0xf]
      %v1468 = vld [vmem:[%s1456 + $0x2c] sm:$0xf]
      %v1469 = vld [vmem:[%s1456 + $0x30] sm:$0xf]
      %v1470 = vld [vmem:[%s1456 + $0x34] sm:$0xf]
      %v1471 = vld [vmem:[%s1456 + $0x38] sm:$0xf]
      %v1472 = vld [vmem:[%s1456 + $0x3c] sm:$0xf]
      %v1489 = vunpack.c.l.b16 %v1457
      %v1490 = vunpack.c.l.b16 %v1458
      %v1491 = vunpack.c.l.b16 %v1459
      %v1492 = vunpack.c.l.b16 %v1460
      %v1493 = vunpack.c.l.b16 %v1461
      %v1494 = vunpack.c.l.b16 %v1462
      %v1495 = vunpack.c.l.b16 %v1463
      %v1496 = vunpack.c.l.b16 %v1464
      %v1497 = vunpack.c.l.b16 %v1465
      %v1498 = vunpack.c.l.b16 %v1466
      %v1499 = vunpack.c.l.b16 %v1467
      %v1500 = vunpack.c.l.b16 %v1468
      %v1501 = vunpack.c.l.b16 %v1469
      %v1502 = vunpack.c.l.b16 %v1470
      %v1503 = vunpack.c.l.b16 %v1471
      %v1504 = vunpack.c.l.b16 %v1472
      %v1505 = vpack.c.b16 %v1490, %v1489
      %v1506 = vpack.c.b16 %v1492, %v1491
      %v1507 = vpack.c.b16 %v1494, %v1493
      %v1508 = vpack.c.b16 %v1496, %v1495
      %v1509 = vpack.c.b16 %v1498, %v1497
      %v1510 = vpack.c.b16 %v1500, %v1499
      %v1511 = vpack.c.b16 %v1502, %v1501
      %v1512 = vpack.c.b16 %v1504, %v1503
      %1521 = vmatprep.subr.bf16.mxu0 0
      %1522 = vmatpush1.bf16.msra.mxu0 %v1505
      %1523 = vmatprep.subr.bf16.mxu0 0
      %1524 = vmatpush1.bf16.msra.mxu0 %v1506
      %1525 = vmatprep.subr.bf16.mxu0 0
      %1526 = vmatpush1.bf16.msra.mxu0 %v1507
      %1527 = vmatprep.subr.bf16.mxu0 0
      %1528 = vmatpush1.bf16.msra.mxu0 %v1508
      %1529 = vmatprep.subr.bf16.mxu0 0
      %1530 = vmatpush1.bf16.msra.mxu0 %v1509
      %1531 = vmatprep.subr.bf16.mxu0 0
      %1532 = vmatpush1.bf16.msra.mxu0 %v1510
      %1533 = vmatprep.subr.bf16.mxu0 0
      %1534 = vmatpush1.bf16.msra.mxu0 %v1511
      %1535 = vmatprep.subr.bf16.mxu0 0
      %1536 = vmatpush1.bf16.msra.mxu0 %v1512
      %1537 = vmatprep.subr.bf16.mxu0 0
      %1538 = vmatpush1.bf16.msra.mxu0 0
      %1539 = vmatprep.subr.bf16.mxu0 0
      %1540 = vmatpush1.bf16.msra.mxu0 0
      %1541 = vmatprep.subr.bf16.mxu0 0
      %1542 = vmatpush1.bf16.msra.mxu0 0
      %1543 = vmatprep.subr.bf16.mxu0 0
      %1544 = vmatpush1.bf16.msra.mxu0 0
      %1545 = vmatprep.subr.bf16.mxu0 0
      %1546 = vmatpush1.bf16.msra.mxu0 0
      %1547 = vmatprep.subr.bf16.mxu0 0
      %1548 = vmatpush1.bf16.msra.mxu0 0
      %1549 = vmatprep.subr.bf16.mxu0 0
      %1550 = vmatpush1.bf16.msra.mxu0 0
      %1551 = vmatprep.subr.bf16.mxu0 0
      %1552 = vmatpush1.bf16.msra.mxu0 0
      %1553 = vmatprep.mubr.bf16.mxu0 0
      %1554 = vmatmul.mubr.bf16.gmra.mrb[0].mxu0 %v1455
      %v1555 = vpop.f32.mrb[0].mxu0
      %v1556 = vadd.f32 0.0, %v1555
      %v1557 = vpop.f32.mrb[0].mxu0
      %v1558 = vpop.f32.mrb[0].mxu0
      %v1559 = vadd.f32 0.0, %v1558
      %v1560 = vpop.f32.mrb[0].mxu0
      %1561 = vdwg.mxu0
      %v1562 = vadd.f32 %v1451, %v1556
      %v1563 = vadd.f32 %v1452, %v1559
      %v1564 = vld [vmem:[#allocation3 + $0x8] sm:$0xff]
      %v1565 = vld [vmem:[#allocation3 + $0x10] sm:$0xff]
      %v1566 = vpack.c.bf16 %v1565, %v1564
      %s1567 = scalar_lea.vmem %s3, 320
      %v1568 = vld [vmem:[%s1567] sm:$0xf]
      %v1569 = vld [vmem:[%s1567 + $0x4] sm:$0xf]
      %v1570 = vld [vmem:[%s1567 + $0x8] sm:$0xf]
      %v1571 = vld [vmem:[%s1567 + $0xc] sm:$0xf]
      %v1572 = vld [vmem:[%s1567 + $0x10] sm:$0xf]
      %v1573 = vld [vmem:[%s1567 + $0x14] sm:$0xf]
      %v1574 = vld [vmem:[%s1567 + $0x18] sm:$0xf]
      %v1575 = vld [vmem:[%s1567 + $0x1c] sm:$0xf]
      %v1576 = vld [vmem:[%s1567 + $0x20] sm:$0xf]
      %v1577 = vld [vmem:[%s1567 + $0x24] sm:$0xf]
      %v1578 = vld [vmem:[%s1567 + $0x28] sm:$0xf]
      %v1579 = vld [vmem:[%s1567 + $0x2c] sm:$0xf]
      %v1580 = vld [vmem:[%s1567 + $0x30] sm:$0xf]
      %v1581 = vld [vmem:[%s1567 + $0x34] sm:$0xf]
      %v1582 = vld [vmem:[%s1567 + $0x38] sm:$0xf]
      %v1583 = vld [vmem:[%s1567 + $0x3c] sm:$0xf]
      %v1600 = vunpack.c.l.b16 %v1568
      %v1601 = vunpack.c.l.b16 %v1569
      %v1602 = vunpack.c.l.b16 %v1570
      %v1603 = vunpack.c.l.b16 %v1571
      %v1604 = vunpack.c.l.b16 %v1572
      %v1605 = vunpack.c.l.b16 %v1573
      %v1606 = vunpack.c.l.b16 %v1574
      %v1607 = vunpack.c.l.b16 %v1575
      %v1608 = vunpack.c.l.b16 %v1576
      %v1609 = vunpack.c.l.b16 %v1577
      %v1610 = vunpack.c.l.b16 %v1578
      %v1611 = vunpack.c.l.b16 %v1579
      %v1612 = vunpack.c.l.b16 %v1580
      %v1613 = vunpack.c.l.b16 %v1581
      %v1614 = vunpack.c.l.b16 %v1582
      %v1615 = vunpack.c.l.b16 %v1583
      %v1616 = vpack.c.b16 %v1601, %v1600
      %v1617 = vpack.c.b16 %v1603, %v1602
      %v1618 = vpack.c.b16 %v1605, %v1604
      %v1619 = vpack.c.b16 %v1607, %v1606
      %v1620 = vpack.c.b16 %v1609, %v1608
      %v1621 = vpack.c.b16 %v1611, %v1610
      %v1622 = vpack.c.b16 %v1613, %v1612
      %v1623 = vpack.c.b16 %v1615, %v1614
      %1632 = vmatprep.subr.bf16.mxu0 0
      %1633 = vmatpush1.bf16.msra.mxu0 %v1616
      %1634 = vmatprep.subr.bf16.mxu0 0
      %1635 = vmatpush1.bf16.msra.mxu0 %v1617
      %1636 = vmatprep.subr.bf16.mxu0 0
      %1637 = vmatpush1.bf16.msra.mxu0 %v1618
      %1638 = vmatprep.subr.bf16.mxu0 0
      %1639 = vmatpush1.bf16.msra.mxu0 %v1619
      %1640 = vmatprep.subr.bf16.mxu0 0
      %1641 = vmatpush1.bf16.msra.mxu0 %v1620
      %1642 = vmatprep.subr.bf16.mxu0 0
      %1643 = vmatpush1.bf16.msra.mxu0 %v1621
      %1644 = vmatprep.subr.bf16.mxu0 0
      %1645 = vmatpush1.bf16.msra.mxu0 %v1622
      %1646 = vmatprep.subr.bf16.mxu0 0
      %1647 = vmatpush1.bf16.msra.mxu0 %v1623
      %1648 = vmatprep.subr.bf16.mxu0 0
      %1649 = vmatpush1.bf16.msra.mxu0 0
      %1650 = vmatprep.subr.bf16.mxu0 0
      %1651 = vmatpush1.bf16.msra.mxu0 0
      %1652 = vmatprep.subr.bf16.mxu0 0
      %1653 = vmatpush1.bf16.msra.mxu0 0
      %1654 = vmatprep.subr.bf16.mxu0 0
      %1655 = vmatpush1.bf16.msra.mxu0 0
      %1656 = vmatprep.subr.bf16.mxu0 0
      %1657 = vmatpush1.bf16.msra.mxu0 0
      %1658 = vmatprep.subr.bf16.mxu0 0
      %1659 = vmatpush1.bf16.msra.mxu0 0
      %1660 = vmatprep.subr.bf16.mxu0 0
      %1661 = vmatpush1.bf16.msra.mxu0 0
      %1662 = vmatprep.subr.bf16.mxu0 0
      %1663 = vmatpush1.bf16.msra.mxu0 0
      %1664 = vmatprep.mubr.bf16.mxu0 0
      %1665 = vmatmul.mubr.bf16.gmra.mrb[0].mxu0 %v1566
      %v1666 = vpop.f32.mrb[0].mxu0
      %v1667 = vadd.f32 0.0, %v1666
      %v1668 = vpop.f32.mrb[0].mxu0
      %v1669 = vpop.f32.mrb[0].mxu0
      %v1670 = vadd.f32 0.0, %v1669
      %v1671 = vpop.f32.mrb[0].mxu0
      %1672 = vdwg.mxu0
      %v1673 = vadd.f32 %v1562, %v1667
      %v1674 = vadd.f32 %v1563, %v1670
      %v1675 = vmax.f32 %v1673, 0.0
      %v1676 = vmax.f32 %v1674, 0.0
      %v1677 = vld [vmem:[#allocation2 + $0x8] sm:$0xff]
      %v1678 = vld [vmem:[#allocation2 + $0x10] sm:$0xff]
      %v1679 = vadd.f32 %v1675, %v1677
      %v1680 = vadd.f32 %v1676, %v1678
      %v1681 = vmax.f32 %v1679, 0.0
      %v1682 = vmax.f32 %v1680, 0.0
      %1683 = vst [vmem:[#allocation2 + $0x8] sm:$0xff] %v1681
      %1684 = vst [vmem:[#allocation2 + $0x10] sm:$0xff] %v1682
      %s1685 = scalar_lea.vmem [#allocation4], 16
      %v1686 = vld [vmem:[%s1685] sm:$0xff]
      %1687 = vst [vmem:[#allocation2] sm:$0xff] %v1686
      %v1688 = vld [vmem:[#allocation2 + $0x10] sm:$0xff]
      %1689 = vst [vmem:[%s1685] sm:$0xff] %v1688
      %s1690 = scalar_lea.vmem %s2, 2
      %v1691 = vld [vmem:[%s1690] sm:$0x1]
      %v1693 = vlaneseq
      %v1694 = vshrl.u32 %v1693, 7
      %v1695 = vsub.s32 0, %v1694
      %v1696 = vrot.slane %v1691, %v1695
      %v1698 = vld [vmem:[#allocation2] sm:$0xff]
      %v1699 = vld [vmem:[#allocation2 + $0x8] sm:$0xff]
      %v1700 = vpack.c.bf16 %v1699, %v1698
      %s1701 = scalar_lea.vmem %s1, 384
      %v1702 = vld [vmem:[%s1701] sm:$0xf]
      %v1703 = vld [vmem:[%s1701 + $0x4] sm:$0xf]
      %v1704 = vld [vmem:[%s1701 + $0x8] sm:$0xf]
      %v1705 = vld [vmem:[%s1701 + $0xc] sm:$0xf]
      %v1706 = vld [vmem:[%s1701 + $0x10] sm:$0xf]
      %v1707 = vld [vmem:[%s1701 + $0x14] sm:$0xf]
      %v1708 = vld [vmem:[%s1701 + $0x18] sm:$0xf]
      %v1709 = vld [vmem:[%s1701 + $0x1c] sm:$0xf]
      %v1710 = vld [vmem:[%s1701 + $0x20] sm:$0xf]
      %v1711 = vld [vmem:[%s1701 + $0x24] sm:$0xf]
      %v1712 = vld [vmem:[%s1701 + $0x28] sm:$0xf]
      %v1713 = vld [vmem:[%s1701 + $0x2c] sm:$0xf]
      %v1714 = vld [vmem:[%s1701 + $0x30] sm:$0xf]
      %v1715 = vld [vmem:[%s1701 + $0x34] sm:$0xf]
      %v1716 = vld [vmem:[%s1701 + $0x38] sm:$0xf]
      %v1717 = vld [vmem:[%s1701 + $0x3c] sm:$0xf]
      %v1734 = vunpack.c.l.b16 %v1702
      %v1735 = vunpack.c.l.b16 %v1703
      %v1736 = vunpack.c.l.b16 %v1704
      %v1737 = vunpack.c.l.b16 %v1705
      %v1738 = vunpack.c.l.b16 %v1706
      %v1739 = vunpack.c.l.b16 %v1707
      %v1740 = vunpack.c.l.b16 %v1708
      %v1741 = vunpack.c.l.b16 %v1709
      %v1742 = vunpack.c.l.b16 %v1710
      %v1743 = vunpack.c.l.b16 %v1711
      %v1744 = vunpack.c.l.b16 %v1712
      %v1745 = vunpack.c.l.b16 %v1713
      %v1746 = vunpack.c.l.b16 %v1714
      %v1747 = vunpack.c.l.b16 %v1715
      %v1748 = vunpack.c.l.b16 %v1716
      %v1749 = vunpack.c.l.b16 %v1717
      %v1750 = vpack.c.b16 %v1735, %v1734
      %v1751 = vpack.c.b16 %v1737, %v1736
      %v1752 = vpack.c.b16 %v1739, %v1738
      %v1753 = vpack.c.b16 %v1741, %v1740
      %v1754 = vpack.c.b16 %v1743, %v1742
      %v1755 = vpack.c.b16 %v1745, %v1744
      %v1756 = vpack.c.b16 %v1747, %v1746
      %v1757 = vpack.c.b16 %v1749, %v1748
      %1766 = vmatprep.subr.bf16.mxu0 0
      %1767 = vmatpush1.bf16.msra.mxu0 %v1750
      %1768 = vmatprep.subr.bf16.mxu0 0
      %1769 = vmatpush1.bf16.msra.mxu0 %v1751
      %1770 = vmatprep.subr.bf16.mxu0 0
      %1771 = vmatpush1.bf16.msra.mxu0 %v1752
      %1772 = vmatprep.subr.bf16.mxu0 0
      %1773 = vmatpush1.bf16.msra.mxu0 %v1753
      %1774 = vmatprep.subr.bf16.mxu0 0
      %1775 = vmatpush1.bf16.msra.mxu0 %v1754
      %1776 = vmatprep.subr.bf16.mxu0 0
      %1777 = vmatpush1.bf16.msra.mxu0 %v1755
      %1778 = vmatprep.subr.bf16.mxu0 0
      %1779 = vmatpush1.bf16.msra.mxu0 %v1756
      %1780 = vmatprep.subr.bf16.mxu0 0
      %1781 = vmatpush1.bf16.msra.mxu0 %v1757
      %1782 = vmatprep.subr.bf16.mxu0 0
      %1783 = vmatpush1.bf16.msra.mxu0 0
      %1784 = vmatprep.subr.bf16.mxu0 0
      %1785 = vmatpush1.bf16.msra.mxu0 0
      %1786 = vmatprep.subr.bf16.mxu0 0
      %1787 = vmatpush1.bf16.msra.mxu0 0
      %1788 = vmatprep.subr.bf16.mxu0 0
      %1789 = vmatpush1.bf16.msra.mxu0 0
      %1790 = vmatprep.subr.bf16.mxu0 0
      %1791 = vmatpush1.bf16.msra.mxu0 0
      %1792 = vmatprep.subr.bf16.mxu0 0
      %1793 = vmatpush1.bf16.msra.mxu0 0
      %1794 = vmatprep.subr.bf16.mxu0 0
      %1795 = vmatpush1.bf16.msra.mxu0 0
      %1796 = vmatprep.subr.bf16.mxu0 0
      %1797 = vmatpush1.bf16.msra.mxu0 0
      %1798 = vmatprep.mubr.bf16.mxu0 0
      %1799 = vmatmul.mubr.bf16.gmra.mrb[0].mxu0 %v1700
      %v1800 = vpop.f32.mrb[0].mxu0
      %v1801 = vadd.f32 0.0, %v1800
      %v1802 = vpop.f32.mrb[0].mxu0
      %v1803 = vpop.f32.mrb[0].mxu0
      %v1804 = vadd.f32 0.0, %v1803
      %v1805 = vpop.f32.mrb[0].mxu0
      %1806 = vdwg.mxu0
      %v1807 = vadd.f32 %v1696, %v1801
      %v1808 = vadd.f32 %v1696, %v1804
      %v1809 = vld [vmem:[#allocation2 + $0x4] sm:$0xff]
      %v1810 = vld [vmem:[#allocation2 + $0xc] sm:$0xff]
      %v1811 = vpack.c.bf16 %v1810, %v1809
      %s1812 = scalar_lea.vmem %s1, 448
      %v1813 = vld [vmem:[%s1812] sm:$0xf]
      %v1814 = vld [vmem:[%s1812 + $0x4] sm:$0xf]
      %v1815 = vld [vmem:[%s1812 + $0x8] sm:$0xf]
      %v1816 = vld [vmem:[%s1812 + $0xc] sm:$0xf]
      %v1817 = vld [vmem:[%s1812 + $0x10] sm:$0xf]
      %v1818 = vld [vmem:[%s1812 + $0x14] sm:$0xf]
      %v1819 = vld [vmem:[%s1812 + $0x18] sm:$0xf]
      %v1820 = vld [vmem:[%s1812 + $0x1c] sm:$0xf]
      %v1821 = vld [vmem:[%s1812 + $0x20] sm:$0xf]
      %v1822 = vld [vmem:[%s1812 + $0x24] sm:$0xf]
      %v1823 = vld [vmem:[%s1812 + $0x28] sm:$0xf]
      %v1824 = vld [vmem:[%s1812 + $0x2c] sm:$0xf]
      %v1825 = vld [vmem:[%s1812 + $0x30] sm:$0xf]
      %v1826 = vld [vmem:[%s1812 + $0x34] sm:$0xf]
      %v1827 = vld [vmem:[%s1812 + $0x38] sm:$0xf]
      %v1828 = vld [vmem:[%s1812 + $0x3c] sm:$0xf]
      %v1845 = vunpack.c.l.b16 %v1813
      %v1846 = vunpack.c.l.b16 %v1814
      %v1847 = vunpack.c.l.b16 %v1815
      %v1848 = vunpack.c.l.b16 %v1816
      %v1849 = vunpack.c.l.b16 %v1817
      %v1850 = vunpack.c.l.b16 %v1818
      %v1851 = vunpack.c.l.b16 %v1819
      %v1852 = vunpack.c.l.b16 %v1820
      %v1853 = vunpack.c.l.b16 %v1821
      %v1854 = vunpack.c.l.b16 %v1822
      %v1855 = vunpack.c.l.b16 %v1823
      %v1856 = vunpack.c.l.b16 %v1824
      %v1857 = vunpack.c.l.b16 %v1825
      %v1858 = vunpack.c.l.b16 %v1826
      %v1859 = vunpack.c.l.b16 %v1827
      %v1860 = vunpack.c.l.b16 %v1828
      %v1861 = vpack.c.b16 %v1846, %v1845
      %v1862 = vpack.c.b16 %v1848, %v1847
      %v1863 = vpack.c.b16 %v1850, %v1849
      %v1864 = vpack.c.b16 %v1852, %v1851
      %v1865 = vpack.c.b16 %v1854, %v1853
      %v1866 = vpack.c.b16 %v1856, %v1855
      %v1867 = vpack.c.b16 %v1858, %v1857
      %v1868 = vpack.c.b16 %v1860, %v1859
      %1877 = vmatprep.subr.bf16.mxu0 0
      %1878 = vmatpush1.bf16.msra.mxu0 %v1861
      %1879 = vmatprep.subr.bf16.mxu0 0
      %1880 = vmatpush1.bf16.msra.mxu0 %v1862
      %1881 = vmatprep.subr.bf16.mxu0 0
      %1882 = vmatpush1.bf16.msra.mxu0 %v1863
      %1883 = vmatprep.subr.bf16.mxu0 0
      %1884 = vmatpush1.bf16.msra.mxu0 %v1864
      %1885 = vmatprep.subr.bf16.mxu0 0
      %1886 = vmatpush1.bf16.msra.mxu0 %v1865
      %1887 = vmatprep.subr.bf16.mxu0 0
      %1888 = vmatpush1.bf16.msra.mxu0 %v1866
      %1889 = vmatprep.subr.bf16.mxu0 0
      %1890 = vmatpush1.bf16.msra.mxu0 %v1867
      %1891 = vmatprep.subr.bf16.mxu0 0
      %1892 = vmatpush1.bf16.msra.mxu0 %v1868
      %1893 = vmatprep.subr.bf16.mxu0 0
      %1894 = vmatpush1.bf16.msra.mxu0 0
      %1895 = vmatprep.subr.bf16.mxu0 0
      %1896 = vmatpush1.bf16.msra.mxu0 0
      %1897 = vmatprep.subr.bf16.mxu0 0
      %1898 = vmatpush1.bf16.msra.mxu0 0
      %1899 = vmatprep.subr.bf16.mxu0 0
      %1900 = vmatpush1.bf16.msra.mxu0 0
      %1901 = vmatprep.subr.bf16.mxu0 0
      %1902 = vmatpush1.bf16.msra.mxu0 0
      %1903 = vmatprep.subr.bf16.mxu0 0
      %1904 = vmatpush1.bf16.msra.mxu0 0
      %1905 = vmatprep.subr.bf16.mxu0 0
      %1906 = vmatpush1.bf16.msra.mxu0 0
      %1907 = vmatprep.subr.bf16.mxu0 0
      %1908 = vmatpush1.bf16.msra.mxu0 0
      %1909 = vmatprep.mubr.bf16.mxu0 0
      %1910 = vmatmul.mubr.bf16.gmra.mrb[0].mxu0 %v1811
      %v1911 = vpop.f32.mrb[0].mxu0
      %v1912 = vadd.f32 0.0, %v1911
      %v1913 = vpop.f32.mrb[0].mxu0
      %v1914 = vpop.f32.mrb[0].mxu0
      %v1915 = vadd.f32 0.0, %v1914
      %v1916 = vpop.f32.mrb[0].mxu0
      %1917 = vdwg.mxu0
      %v1918 = vadd.f32 %v1807, %v1912
      %v1919 = vadd.f32 %v1808, %v1915
      %v1920 = vld [vmem:[#allocation2 + $0x8] sm:$0xff]
      %v1921 = vld [vmem:[#allocation2 + $0x10] sm:$0xff]
      %v1922 = vpack.c.bf16 %v1921, %v1920
      %s1923 = scalar_lea.vmem %s1, 512
      %v1924 = vld [vmem:[%s1923] sm:$0xf]
      %v1925 = vld [vmem:[%s1923 + $0x4] sm:$0xf]
      %v1926 = vld [vmem:[%s1923 + $0x8] sm:$0xf]
      %v1927 = vld [vmem:[%s1923 + $0xc] sm:$0xf]
      %v1928 = vld [vmem:[%s1923 + $0x10] sm:$0xf]
      %v1929 = vld [vmem:[%s1923 + $0x14] sm:$0xf]
      %v1930 = vld [vmem:[%s1923 + $0x18] sm:$0xf]
      %v1931 = vld [vmem:[%s1923 + $0x1c] sm:$0xf]
      %v1932 = vld [vmem:[%s1923 + $0x20] sm:$0xf]
      %v1933 = vld [vmem:[%s1923 + $0x24] sm:$0xf]
      %v1934 = vld [vmem:[%s1923 + $0x28] sm:$0xf]
      %v1935 = vld [vmem:[%s1923 + $0x2c] sm:$0xf]
      %v1936 = vld [vmem:[%s1923 + $0x30] sm:$0xf]
      %v1937 = vld [vmem:[%s1923 + $0x34] sm:$0xf]
      %v1938 = vld [vmem:[%s1923 + $0x38] sm:$0xf]
      %v1939 = vld [vmem:[%s1923 + $0x3c] sm:$0xf]
      %v1956 = vunpack.c.l.b16 %v1924
      %v1957 = vunpack.c.l.b16 %v1925
      %v1958 = vunpack.c.l.b16 %v1926
      %v1959 = vunpack.c.l.b16 %v1927
      %v1960 = vunpack.c.l.b16 %v1928
      %v1961 = vunpack.c.l.b16 %v1929
      %v1962 = vunpack.c.l.b16 %v1930
      %v1963 = vunpack.c.l.b16 %v1931
      %v1964 = vunpack.c.l.b16 %v1932
      %v1965 = vunpack.c.l.b16 %v1933
      %v1966 = vunpack.c.l.b16 %v1934
      %v1967 = vunpack.c.l.b16 %v1935
      %v1968 = vunpack.c.l.b16 %v1936
      %v1969 = vunpack.c.l.b16 %v1937
      %v1970 = vunpack.c.l.b16 %v1938
      %v1971 = vunpack.c.l.b16 %v1939
      %v1972 = vpack.c.b16 %v1957, %v1956
      %v1973 = vpack.c.b16 %v1959, %v1958
      %v1974 = vpack.c.b16 %v1961, %v1960
      %v1975 = vpack.c.b16 %v1963, %v1962
      %v1976 = vpack.c.b16 %v1965, %v1964
      %v1977 = vpack.c.b16 %v1967, %v1966
      %v1978 = vpack.c.b16 %v1969, %v1968
      %v1979 = vpack.c.b16 %v1971, %v1970
      %1988 = vmatprep.subr.bf16.mxu0 0
      %1989 = vmatpush1.bf16.msra.mxu0 %v1972
      %1990 = vmatprep.subr.bf16.mxu0 0
      %1991 = vmatpush1.bf16.msra.mxu0 %v1973
      %1992 = vmatprep.subr.bf16.mxu0 0
      %1993 = vmatpush1.bf16.msra.mxu0 %v1974
      %1994 = vmatprep.subr.bf16.mxu0 0
      %1995 = vmatpush1.bf16.msra.mxu0 %v1975
      %1996 = vmatprep.subr.bf16.mxu0 0
      %1997 = vmatpush1.bf16.msra.mxu0 %v1976
      %1998 = vmatprep.subr.bf16.mxu0 0
      %1999 = vmatpush1.bf16.msra.mxu0 %v1977
      %2000 = vmatprep.subr.bf16.mxu0 0
      %2001 = vmatpush1.bf16.msra.mxu0 %v1978
      %2002 = vmatprep.subr.bf16.mxu0 0
      %2003 = vmatpush1.bf16.msra.mxu0 %v1979
      %2004 = vmatprep.subr.bf16.mxu0 0
      %2005 = vmatpush1.bf16.msra.mxu0 0
      %2006 = vmatprep.subr.bf16.mxu0 0
      %2007 = vmatpush1.bf16.msra.mxu0 0
      %2008 = vmatprep.subr.bf16.mxu0 0
      %2009 = vmatpush1.bf16.msra.mxu0 0
      %2010 = vmatprep.subr.bf16.mxu0 0
      %2011 = vmatpush1.bf16.msra.mxu0 0
      %2012 = vmatprep.subr.bf16.mxu0 0
      %2013 = vmatpush1.bf16.msra.mxu0 0
      %2014 = vmatprep.subr.bf16.mxu0 0
      %2015 = vmatpush1.bf16.msra.mxu0 0
      %2016 = vmatprep.subr.bf16.mxu0 0
      %2017 = vmatpush1.bf16.msra.mxu0 0
      %2018 = vmatprep.subr.bf16.mxu0 0
      %2019 = vmatpush1.bf16.msra.mxu0 0
      %2020 = vmatprep.mubr.bf16.mxu0 0
      %2021 = vmatmul.mubr.bf16.gmra.mrb[0].mxu0 %v1922
      %v2022 = vpop.f32.mrb[0].mxu0
      %v2023 = vadd.f32 0.0, %v2022
      %v2024 = vpop.f32.mrb[0].mxu0
      %v2025 = vpop.f32.mrb[0].mxu0
      %v2026 = vadd.f32 0.0, %v2025
      %v2027 = vpop.f32.mrb[0].mxu0
      %2028 = vdwg.mxu0
      %v2029 = vadd.f32 %v1918, %v2023
      %v2030 = vadd.f32 %v1919, %v2026
      %v2031 = vmax.f32 %v2029, 0.0
      %v2032 = vmax.f32 %v2030, 0.0
      %s2033 = scalar_lea.vmem [#allocation5], 16
      %v2034 = vld [vmem:[%s2033] sm:$0xff]
      %2035 = vst [vmem:[#allocation3] sm:$0xff] %v2034
      %2036 = vst [vmem:[#allocation3 + $0x8] sm:$0xff] %v2031
      %2037 = vst [vmem:[#allocation3 + $0x10] sm:$0xff] %v2032
      %v2038 = vld [vmem:[#allocation3 + $0x10] sm:$0xff]
      %2039 = vst [vmem:[%s2033] sm:$0xff] %v2038
      %s2040 = scalar_lea.vmem %s4, 2
      %v2041 = vld [vmem:[%s2040] sm:$0x1]
      %v2043 = vlaneseq
      %v2044 = vshrl.u32 %v2043, 7
      %v2045 = vsub.s32 0, %v2044
      %v2046 = vrot.slane %v2041, %v2045
      %v2048 = vld [vmem:[#allocation3] sm:$0xff]
      %v2049 = vld [vmem:[#allocation3 + $0x8] sm:$0xff]
      %v2050 = vpack.c.bf16 %v2049, %v2048
      %s2051 = scalar_lea.vmem %s3, 384
      %v2052 = vld [vmem:[%s2051] sm:$0xf]
      %v2053 = vld [vmem:[%s2051 + $0x4] sm:$0xf]
      %v2054 = vld [vmem:[%s2051 + $0x8] sm:$0xf]
      %v2055 = vld [vmem:[%s2051 + $0xc] sm:$0xf]
      %v2056 = vld [vmem:[%s2051 + $0x10] sm:$0xf]
      %v2057 = vld [vmem:[%s2051 + $0x14] sm:$0xf]
      %v2058 = vld [vmem:[%s2051 + $0x18] sm:$0xf]
      %v2059 = vld [vmem:[%s2051 + $0x1c] sm:$0xf]
      %v2060 = vld [vmem:[%s2051 + $0x20] sm:$0xf]
      %v2061 = vld [vmem:[%s2051 + $0x24] sm:$0xf]
      %v2062 = vld [vmem:[%s2051 + $0x28] sm:$0xf]
      %v2063 = vld [vmem:[%s2051 + $0x2c] sm:$0xf]
      %v2064 = vld [vmem:[%s2051 + $0x30] sm:$0xf]
      %v2065 = vld [vmem:[%s2051 + $0x34] sm:$0xf]
      %v2066 = vld [vmem:[%s2051 + $0x38] sm:$0xf]
      %v2067 = vld [vmem:[%s2051 + $0x3c] sm:$0xf]
      %v2084 = vunpack.c.l.b16 %v2052
      %v2085 = vunpack.c.l.b16 %v2053
      %v2086 = vunpack.c.l.b16 %v2054
      %v2087 = vunpack.c.l.b16 %v2055
      %v2088 = vunpack.c.l.b16 %v2056
      %v2089 = vunpack.c.l.b16 %v2057
      %v2090 = vunpack.c.l.b16 %v2058
      %v2091 = vunpack.c.l.b16 %v2059
      %v2092 = vunpack.c.l.b16 %v2060
      %v2093 = vunpack.c.l.b16 %v2061
      %v2094 = vunpack.c.l.b16 %v2062
      %v2095 = vunpack.c.l.b16 %v2063
      %v2096 = vunpack.c.l.b16 %v2064
      %v2097 = vunpack.c.l.b16 %v2065
      %v2098 = vunpack.c.l.b16 %v2066
      %v2099 = vunpack.c.l.b16 %v2067
      %v2100 = vpack.c.b16 %v2085, %v2084
      %v2101 = vpack.c.b16 %v2087, %v2086
      %v2102 = vpack.c.b16 %v2089, %v2088
      %v2103 = vpack.c.b16 %v2091, %v2090
      %v2104 = vpack.c.b16 %v2093, %v2092
      %v2105 = vpack.c.b16 %v2095, %v2094
      %v2106 = vpack.c.b16 %v2097, %v2096
      %v2107 = vpack.c.b16 %v2099, %v2098
      %2116 = vmatprep.subr.bf16.mxu0 0
      %2117 = vmatpush1.bf16.msra.mxu0 %v2100
      %2118 = vmatprep.subr.bf16.mxu0 0
      %2119 = vmatpush1.bf16.msra.mxu0 %v2101
      %2120 = vmatprep.subr.bf16.mxu0 0
      %2121 = vmatpush1.bf16.msra.mxu0 %v2102
      %2122 = vmatprep.subr.bf16.mxu0 0
      %2123 = vmatpush1.bf16.msra.mxu0 %v2103
      %2124 = vmatprep.subr.bf16.mxu0 0
      %2125 = vmatpush1.bf16.msra.mxu0 %v2104
      %2126 = vmatprep.subr.bf16.mxu0 0
      %2127 = vmatpush1.bf16.msra.mxu0 %v2105
      %2128 = vmatprep.subr.bf16.mxu0 0
      %2129 = vmatpush1.bf16.msra.mxu0 %v2106
      %2130 = vmatprep.subr.bf16.mxu0 0
      %2131 = vmatpush1.bf16.msra.mxu0 %v2107
      %2132 = vmatprep.subr.bf16.mxu0 0
      %2133 = vmatpush1.bf16.msra.mxu0 0
      %2134 = vmatprep.subr.bf16.mxu0 0
      %2135 = vmatpush1.bf16.msra.mxu0 0
      %2136 = vmatprep.subr.bf16.mxu0 0
      %2137 = vmatpush1.bf16.msra.mxu0 0
      %2138 = vmatprep.subr.bf16.mxu0 0
      %2139 = vmatpush1.bf16.msra.mxu0 0
      %2140 = vmatprep.subr.bf16.mxu0 0
      %2141 = vmatpush1.bf16.msra.mxu0 0
      %2142 = vmatprep.subr.bf16.mxu0 0
      %2143 = vmatpush1.bf16.msra.mxu0 0
      %2144 = vmatprep.subr.bf16.mxu0 0
      %2145 = vmatpush1.bf16.msra.mxu0 0
      %2146 = vmatprep.subr.bf16.mxu0 0
      %2147 = vmatpush1.bf16.msra.mxu0 0
      %2148 = vmatprep.mubr.bf16.mxu0 0
      %2149 = vmatmul.mubr.bf16.gmra.mrb[0].mxu0 %v2050
      %v2150 = vpop.f32.mrb[0].mxu0
      %v2151 = vadd.f32 0.0, %v2150
      %v2152 = vpop.f32.mrb[0].mxu0
      %v2153 = vpop.f32.mrb[0].mxu0
      %v2154 = vadd.f32 0.0, %v2153
      %v2155 = vpop.f32.mrb[0].mxu0
      %2156 = vdwg.mxu0
      %v2157 = vadd.f32 %v2046, %v2151
      %v2158 = vadd.f32 %v2046, %v2154
      %v2159 = vld [vmem:[#allocation3 + $0x4] sm:$0xff]
      %v2160 = vld [vmem:[#allocation3 + $0xc] sm:$0xff]
      %v2161 = vpack.c.bf16 %v2160, %v2159
      %s2162 = scalar_lea.vmem %s3, 448
      %v2163 = vld [vmem:[%s2162] sm:$0xf]
      %v2164 = vld [vmem:[%s2162 + $0x4] sm:$0xf]
      %v2165 = vld [vmem:[%s2162 + $0x8] sm:$0xf]
      %v2166 = vld [vmem:[%s2162 + $0xc] sm:$0xf]
      %v2167 = vld [vmem:[%s2162 + $0x10] sm:$0xf]
      %v2168 = vld [vmem:[%s2162 + $0x14] sm:$0xf]
      %v2169 = vld [vmem:[%s2162 + $0x18] sm:$0xf]
      %v2170 = vld [vmem:[%s2162 + $0x1c] sm:$0xf]
      %v2171 = vld [vmem:[%s2162 + $0x20] sm:$0xf]
      %v2172 = vld [vmem:[%s2162 + $0x24] sm:$0xf]
      %v2173 = vld [vmem:[%s2162 + $0x28] sm:$0xf]
      %v2174 = vld [vmem:[%s2162 + $0x2c] sm:$0xf]
      %v2175 = vld [vmem:[%s2162 + $0x30] sm:$0xf]
      %v2176 = vld [vmem:[%s2162 + $0x34] sm:$0xf]
      %v2177 = vld [vmem:[%s2162 + $0x38] sm:$0xf]
      %v2178 = vld [vmem:[%s2162 + $0x3c] sm:$0xf]
      %v2195 = vunpack.c.l.b16 %v2163
      %v2196 = vunpack.c.l.b16 %v2164
      %v2197 = vunpack.c.l.b16 %v2165
      %v2198 = vunpack.c.l.b16 %v2166
      %v2199 = vunpack.c.l.b16 %v2167
      %v2200 = vunpack.c.l.b16 %v2168
      %v2201 = vunpack.c.l.b16 %v2169
      %v2202 = vunpack.c.l.b16 %v2170
      %v2203 = vunpack.c.l.b16 %v2171
      %v2204 = vunpack.c.l.b16 %v2172
      %v2205 = vunpack.c.l.b16 %v2173
      %v2206 = vunpack.c.l.b16 %v2174
      %v2207 = vunpack.c.l.b16 %v2175
      %v2208 = vunpack.c.l.b16 %v2176
      %v2209 = vunpack.c.l.b16 %v2177
      %v2210 = vunpack.c.l.b16 %v2178
      %v2211 = vpack.c.b16 %v2196, %v2195
      %v2212 = vpack.c.b16 %v2198, %v2197
      %v2213 = vpack.c.b16 %v2200, %v2199
      %v2214 = vpack.c.b16 %v2202, %v2201
      %v2215 = vpack.c.b16 %v2204, %v2203
      %v2216 = vpack.c.b16 %v2206, %v2205
      %v2217 = vpack.c.b16 %v2208, %v2207
      %v2218 = vpack.c.b16 %v2210, %v2209
      %2227 = vmatprep.subr.bf16.mxu0 0
      %2228 = vmatpush1.bf16.msra.mxu0 %v2211
      %2229 = vmatprep.subr.bf16.mxu0 0
      %2230 = vmatpush1.bf16.msra.mxu0 %v2212
      %2231 = vmatprep.subr.bf16.mxu0 0
      %2232 = vmatpush1.bf16.msra.mxu0 %v2213
      %2233 = vmatprep.subr.bf16.mxu0 0
      %2234 = vmatpush1.bf16.msra.mxu0 %v2214
      %2235 = vmatprep.subr.bf16.mxu0 0
      %2236 = vmatpush1.bf16.msra.mxu0 %v2215
      %2237 = vmatprep.subr.bf16.mxu0 0
      %2238 = vmatpush1.bf16.msra.mxu0 %v2216
      %2239 = vmatprep.subr.bf16.mxu0 0
      %2240 = vmatpush1.bf16.msra.mxu0 %v2217
      %2241 = vmatprep.subr.bf16.mxu0 0
      %2242 = vmatpush1.bf16.msra.mxu0 %v2218
      %2243 = vmatprep.subr.bf16.mxu0 0
      %2244 = vmatpush1.bf16.msra.mxu0 0
      %2245 = vmatprep.subr.bf16.mxu0 0
      %2246 = vmatpush1.bf16.msra.mxu0 0
      %2247 = vmatprep.subr.bf16.mxu0 0
      %2248 = vmatpush1.bf16.msra.mxu0 0
      %2249 = vmatprep.subr.bf16.mxu0 0
      %2250 = vmatpush1.bf16.msra.mxu0 0
      %2251 = vmatprep.subr.bf16.mxu0 0
      %2252 = vmatpush1.bf16.msra.mxu0 0
      %2253 = vmatprep.subr.bf16.mxu0 0
      %2254 = vmatpush1.bf16.msra.mxu0 0
      %2255 = vmatprep.subr.bf16.mxu0 0
      %2256 = vmatpush1.bf16.msra.mxu0 0
      %2257 = vmatprep.subr.bf16.mxu0 0
      %2258 = vmatpush1.bf16.msra.mxu0 0
      %2259 = vmatprep.mubr.bf16.mxu0 0
      %2260 = vmatmul.mubr.bf16.gmra.mrb[0].mxu0 %v2161
      %v2261 = vpop.f32.mrb[0].mxu0
      %v2262 = vadd.f32 0.0, %v2261
      %v2263 = vpop.f32.mrb[0].mxu0
      %v2264 = vpop.f32.mrb[0].mxu0
      %v2265 = vadd.f32 0.0, %v2264
      %v2266 = vpop.f32.mrb[0].mxu0
      %2267 = vdwg.mxu0
      %v2268 = vadd.f32 %v2157, %v2262
      %v2269 = vadd.f32 %v2158, %v2265
      %v2270 = vld [vmem:[#allocation3 + $0x8] sm:$0xff]
      %v2271 = vld [vmem:[#allocation3 + $0x10] sm:$0xff]
      %v2272 = vpack.c.bf16 %v2271, %v2270
      %s2273 = scalar_lea.vmem %s3, 512
      %v2274 = vld [vmem:[%s2273] sm:$0xf]
      %v2275 = vld [vmem:[%s2273 + $0x4] sm:$0xf]
      %v2276 = vld [vmem:[%s2273 + $0x8] sm:$0xf]
      %v2277 = vld [vmem:[%s2273 + $0xc] sm:$0xf]
      %v2278 = vld [vmem:[%s2273 + $0x10] sm:$0xf]
      %v2279 = vld [vmem:[%s2273 + $0x14] sm:$0xf]
      %v2280 = vld [vmem:[%s2273 + $0x18] sm:$0xf]
      %v2281 = vld [vmem:[%s2273 + $0x1c] sm:$0xf]
      %v2282 = vld [vmem:[%s2273 + $0x20] sm:$0xf]
      %v2283 = vld [vmem:[%s2273 + $0x24] sm:$0xf]
      %v2284 = vld [vmem:[%s2273 + $0x28] sm:$0xf]
      %v2285 = vld [vmem:[%s2273 + $0x2c] sm:$0xf]
      %v2286 = vld [vmem:[%s2273 + $0x30] sm:$0xf]
      %v2287 = vld [vmem:[%s2273 + $0x34] sm:$0xf]
      %v2288 = vld [vmem:[%s2273 + $0x38] sm:$0xf]
      %v2289 = vld [vmem:[%s2273 + $0x3c] sm:$0xf]
      %v2306 = vunpack.c.l.b16 %v2274
      %v2307 = vunpack.c.l.b16 %v2275
      %v2308 = vunpack.c.l.b16 %v2276
      %v2309 = vunpack.c.l.b16 %v2277
      %v2310 = vunpack.c.l.b16 %v2278
      %v2311 = vunpack.c.l.b16 %v2279
      %v2312 = vunpack.c.l.b16 %v2280
      %v2313 = vunpack.c.l.b16 %v2281
      %v2314 = vunpack.c.l.b16 %v2282
      %v2315 = vunpack.c.l.b16 %v2283
      %v2316 = vunpack.c.l.b16 %v2284
      %v2317 = vunpack.c.l.b16 %v2285
      %v2318 = vunpack.c.l.b16 %v2286
      %v2319 = vunpack.c.l.b16 %v2287
      %v2320 = vunpack.c.l.b16 %v2288
      %v2321 = vunpack.c.l.b16 %v2289
      %v2322 = vpack.c.b16 %v2307, %v2306
      %v2323 = vpack.c.b16 %v2309, %v2308
      %v2324 = vpack.c.b16 %v2311, %v2310
      %v2325 = vpack.c.b16 %v2313, %v2312
      %v2326 = vpack.c.b16 %v2315, %v2314
      %v2327 = vpack.c.b16 %v2317, %v2316
      %v2328 = vpack.c.b16 %v2319, %v2318
      %v2329 = vpack.c.b16 %v2321, %v2320
      %2338 = vmatprep.subr.bf16.mxu0 0
      %2339 = vmatpush1.bf16.msra.mxu0 %v2322
      %2340 = vmatprep.subr.bf16.mxu0 0
      %2341 = vmatpush1.bf16.msra.mxu0 %v2323
      %2342 = vmatprep.subr.bf16.mxu0 0
      %2343 = vmatpush1.bf16.msra.mxu0 %v2324
      %2344 = vmatprep.subr.bf16.mxu0 0
      %2345 = vmatpush1.bf16.msra.mxu0 %v2325
      %2346 = vmatprep.subr.bf16.mxu0 0
      %2347 = vmatpush1.bf16.msra.mxu0 %v2326
      %2348 = vmatprep.subr.bf16.mxu0 0
      %2349 = vmatpush1.bf16.msra.mxu0 %v2327
      %2350 = vmatprep.subr.bf16.mxu0 0
      %2351 = vmatpush1.bf16.msra.mxu0 %v2328
      %2352 = vmatprep.subr.bf16.mxu0 0
      %2353 = vmatpush1.bf16.msra.mxu0 %v2329
      %2354 = vmatprep.subr.bf16.mxu0 0
      %2355 = vmatpush1.bf16.msra.mxu0 0
      %2356 = vmatprep.subr.bf16.mxu0 0
      %2357 = vmatpush1.bf16.msra.mxu0 0
      %2358 = vmatprep.subr.bf16.mxu0 0
      %2359 = vmatpush1.bf16.msra.mxu0 0
      %2360 = vmatprep.subr.bf16.mxu0 0
      %2361 = vmatpush1.bf16.msra.mxu0 0
      %2362 = vmatprep.subr.bf16.mxu0 0
      %2363 = vmatpush1.bf16.msra.mxu0 0
      %2364 = vmatprep.subr.bf16.mxu0 0
      %2365 = vmatpush1.bf16.msra.mxu0 0
      %2366 = vmatprep.subr.bf16.mxu0 0
      %2367 = vmatpush1.bf16.msra.mxu0 0
      %2368 = vmatprep.subr.bf16.mxu0 0
      %2369 = vmatpush1.bf16.msra.mxu0 0
      %2370 = vmatprep.mubr.bf16.mxu0 0
      %2371 = vmatmul.mubr.bf16.gmra.mrb[0].mxu0 %v2272
      %v2372 = vpop.f32.mrb[0].mxu0
      %v2373 = vadd.f32 0.0, %v2372
      %v2374 = vpop.f32.mrb[0].mxu0
      %v2375 = vpop.f32.mrb[0].mxu0
      %v2376 = vadd.f32 0.0, %v2375
      %v2377 = vpop.f32.mrb[0].mxu0
      %2378 = vdwg.mxu0
      %v2379 = vadd.f32 %v2268, %v2373
      %v2380 = vadd.f32 %v2269, %v2376
      %v2381 = vmax.f32 %v2379, 0.0
      %v2382 = vmax.f32 %v2380, 0.0
      %v2383 = vld [vmem:[#allocation2 + $0x8] sm:$0xff]
      %v2384 = vld [vmem:[#allocation2 + $0x10] sm:$0xff]
      %v2385 = vadd.f32 %v2381, %v2383
      %v2386 = vadd.f32 %v2382, %v2384
      %v2387 = vmax.f32 %v2385, 0.0
      %v2388 = vmax.f32 %v2386, 0.0
      %2389 = vst [vmem:[%s262] sm:$0xff] %v2387
      %2390 = vst [vmem:[%s262 + $0x8] sm:$0xff] %v2388
      %s2391 = smul.u32 2, %s21
      %p2392 = scmp.lt.s32.totalorder %s20, 1
      %s2393 = scalar_select %p2392, %s20, 1
      %p2394 = scmp.lt.s32.totalorder %s2391, 5
      %s2395 = scalar_select %p2394, %s2391, 5
      %s2396 = smul.addr %s2393, 6
      %s2397 = sadd.s32 %s2395, %s2396
      %s2398 = smul.addr %s2397, 8
      %s2399 = scalar_lea.vmem %s5, %s2398
      // Predicated region
      $region45: #{tcn_encoder_forward.1} parent=39 // pred_check
        %p2400 = pneg %p160
      $region46: #{tcn_encoder_forward.1} parent=39 // pred_check_branch
        %2402 = sbr.rel (%p2400) target = $region48
      $region47: #{tcn_encoder_forward.1} parent=39 // pred_region
        %s2403 = smul.u32 2, %s21
      $region48: #{tcn_encoder_forward.1} parent=39 // pred_fallthru
        _
    $region40: #{tcn_encoder_forward.1} parent=5 // pred_fallthru
      _
    %p2404 = scmp.le.s32.totalorder 2, %s11
    // Predicated region
    $region49: #{tcn_encoder_forward.1} parent=5 // pred_check
      %p2405 = pneg %p2404
    $region50: #{tcn_encoder_forward.1} parent=5 // pred_check_branch
      %2407 = sbr.rel (%p2405) target = $region52
    $region51: #{tcn_encoder_forward.1} parent=5 // pred_region
      %s2408 = ssub.s32 %s11, 2
      // Predicated region
      $region53: #{tcn_encoder_forward.1} parent=51 // pred_check
        %p2409 = pneg %p166
      $region54: #{tcn_encoder_forward.1} parent=51 // pred_check_branch
        %2411 = sbr.rel (%p2409) target = $region56
      $region55: #{tcn_encoder_forward.1} parent=51 // pred_region
        %s2412 = smul.u32 2, %s23
        %p2413 = scmp.lt.s32.totalorder %s22, 1
        %s2414 = scalar_select %p2413, %s22, 1
        %p2415 = scmp.lt.s32.totalorder %s2412, 5
        %s2416 = scalar_select %p2415, %s2412, 5
        %s2417 = smul.addr %s2414, 6
        %s2418 = sadd.s32 %s2416, %s2417
        %s2419 = smul.addr %s2418, 8
        %s2420 = scalar_lea.vmem %s5, %s2419
      $region56: #{tcn_encoder_forward.1} parent=51 // pred_fallthru
        _
    $region52: #{tcn_encoder_forward.1} parent=5 // pred_fallthru
      _
  $region6: #{tcn_encoder_forward.1} parent=0 // loop_footer
    %s15 = sadd.s32 1, %s11
  $region7: #{tcn_encoder_forward.1} parent=0 // loop_footer_branch
    %10 = sbr.rel target = $region3
  $region8: #{tcn_encoder_forward.1} parent=0 // loop_exit
    _

</llo_original>
